<compile_context>
chip_gen: v7x
topology: tpu7x:2x2x1
jax: 0.10.0
libtpu: 0.0.40
codegen_flags: <defaults>
</compile_context>

<pallas_src>
import functools
import math

import jax
import jax.numpy as jnp
from jax.experimental import pallas as pl
from jax.experimental.pallas import tpu as pltpu


# --------------------------------------------------------------------------
# Fused kernel: one grid step == BB batch elements
# --------------------------------------------------------------------------
def _doctor_fused_kernel(dec_ref, enc_ref, opnd_ref,
                         wq_ref, bq_ref, wk_ref, bk_ref, knw_ref, knb_ref,
                         ln_g_ref, ln_b_ref,
                         lm_ref, left_ref, right_ref, noun_ref):
    """Per grid step (BB batch elements):
         proj  = [dec] @ [Wq1*s | Wq2*s | Wq3*s | lm_w] + [bq1*s|bq2*s|bq3*s|0]
         k_op  = LN(opnd) @ [Wk1 | Wk2] + [bk1 | bk2]
         k_nn  = enc @ Wk3 + bk3
         left  = q1 . k1^T ,  right = q2 . k2^T ,  noun = q3 . k_nn^T
       All shared-weight matmuls are flattened over (BB * rows) for MXU
       utilization; scores are per-batch batched einsums.
    """
    f32 = jnp.float32
    cd = dec_ref.dtype                       # MXU input dtype (bf16 or f32)
    BB, T, D = dec_ref.shape
    S = enc_ref.shape[1]
    P = opnd_ref.shape[1]
    n_ops = wq_ref.shape[1] - 3 * D

    dec2 = dec_ref[...].reshape(BB * T, D)   # (BB*T, D)
    enc2 = enc_ref[...].reshape(BB * S, D)   # (BB*S, D)

    # ---- LayerNorm over operands (f32 input & statistics, eps = 1e-12) ----
    x = opnd_ref[...].astype(f32)            # (BB, P, D) kept f32 for fidelity
    mean = jnp.mean(x, axis=-1, keepdims=True)
    xc = x - mean
    var = jnp.mean(xc * xc, axis=-1, keepdims=True)       # biased var (PyTorch LN)
    opnd_ln = xc * jax.lax.rsqrt(var + 1e-12) * ln_g_ref[...] + ln_b_ref[...]
    opnd2 = opnd_ln.reshape(BB * P, D).astype(cd)          # (BB*P, D)

    # ---- flattened shared-weight projections (wide matmuls, f32 accum) ----
    proj = jnp.dot(dec2, wq_ref[...], preferred_element_type=f32) + bq_ref[...]
    k_op = jnp.dot(opnd2, wk_ref[...], preferred_element_type=f32) + bk_ref[...]
    k_nn = jnp.dot(enc2, knw_ref[...], preferred_element_type=f32) + knb_ref[...]

    # lm logits: last n_ops columns of the fused projection (scale NOT applied
    # to this segment; bias segment is zero). Stored at true width.
    lm_ref[...] = proj[:, 3 * D:].reshape(BB, T, n_ops)

    # Queries / keys back to per-batch 3-D for the batched score matmuls.
    # All slice offsets are multiples of D (D % 128 == 0) -> tile aligned.
    q1 = proj[:, 0 * D:1 * D].astype(cd).reshape(BB, T, D)
    q2 = proj[:, 1 * D:2 * D].astype(cd).reshape(BB, T, D)
    q3 = proj[:, 2 * D:3 * D].astype(cd).reshape(BB, T, D)
    k1 = k_op[:, :D].astype(cd).reshape(BB, P, D)
    k2 = k_op[:, D:].astype(cd).reshape(BB, P, D)
    kn = k_nn.astype(cd).reshape(BB, S, D)

    # Batched q.k^T scores (contract last dims -> no explicit k.T relayout).
    left_ref[...] = jnp.einsum('btd,bpd->btp', q1, k1,
                               preferred_element_type=f32)
    right_ref[...] = jnp.einsum('btd,bpd->btp', q2, k2,
                                preferred_element_type=f32)
    noun_ref[...] = jnp.einsum('btd,bsd->bts', q3, kn,
                               preferred_element_type=f32)


# --------------------------------------------------------------------------
# Parameter preparation (one-time): concat + scale-fold + dtype cast
# --------------------------------------------------------------------------
def _prepare_params(params, compute_dtype):
    f32 = jnp.float32
    cd = compute_dtype
    D = params["opt1_w"].shape[0]
    n_ops = params["lm_w"].shape[1]
    scale = 1.0 / math.sqrt(D)

    # Fused query / lm RHS: [Wq1*s | Wq2*s | Wq3*s | lm_w]  (lm last so every
    # in-kernel slice offset is a multiple of D; lm segment has zero bias).
    w_big = jnp.concatenate(
        [params["opt1_w"] * scale, params["opt2_w"] * scale,
         params["q_w"] * scale, params["lm_w"]], axis=1)
    b_big = jnp.concatenate(
        [params["opt1_b"] * scale, params["opt2_b"] * scale,
         params["q_b"] * scale, jnp.zeros((n_ops,), f32)])

    # Fused operand-key projection: [Wk1 | Wk2].
    wk = jnp.concatenate([params["opnd1_w"], params["opnd2_w"]], axis=1)
    bk = jnp.concatenate([params["opnd1_b"], params["opnd2_b"]])

    return (
        w_big.astype(cd),
        b_big.reshape(1, -1).astype(f32),
        wk.astype(cd),
        bk.reshape(1, -1).astype(f32),
        params["k_w"].astype(cd),
        params["k_b"].reshape(1, D).astype(f32),
        params["ln_g"].reshape(1, D).astype(f32),
        params["ln_b"].reshape(1, D).astype(f32),
    )


def _choose_block_b(B, T, target_rows=512):
    """Pick BB (batch elems / grid step): big enough to feed the MXU, but keep
    at least 2 grid steps whenever B >= 2 so v7x's second TensorCore has work."""
    bb = max(1, min(B, target_rows // max(T, 1)))
    if B >= 2:
        bb = min(bb, max(1, B // 2))
    return bb


# --------------------------------------------------------------------------
# Doctor head-forward (the Pallas-implementable part of Doctor.forward)
# --------------------------------------------------------------------------
def doctor_heads_forward(params, dec_hidden, enc_hidden, opnd_embeddings,
                         *, compute_dtype=jnp.bfloat16, block_b=None):
    """Inputs:
         dec_hidden:      [B, T, D]  (output.last_hidden_state)
         enc_hidden:      [B, S, D]  (output.encoder_last_hidden_state)
         opnd_embeddings: [B, P, D]
       Returns lm_output [B,T,n_ops], operand_left/right [B,T,P],
       noun_weight [B,T,S] -- exactly what Doctor.forward computes before the
       generate/loss branches.
    """
    B, T, D = dec_hidden.shape
    S = enc_hidden.shape[1]
    P = opnd_embeddings.shape[1]
    n_ops = params["lm_w"].shape[1]
    if D % 128 != 0:
        raise ValueError("d_model must be a multiple of 128 (512/768/1024 are).")

    bb = _choose_block_b(B, T) if block_b is None else block_b
    nblk = -(-B // bb)
    b_pad = nblk * bb

    prep = _prepare_params(params, compute_dtype)

    cd = compute_dtype
    dec = dec_hidden.astype(cd)
    enc = enc_hidden.astype(cd)
    opnd = opnd_embeddings.astype(jnp.float32)   # keep f32 for the LayerNorm
    if b_pad != B:
        pad = b_pad - B
        dec = jnp.pad(dec, ((0, pad), (0, 0), (0, 0)))
        enc = jnp.pad(enc, ((0, pad), (0, 0), (0, 0)))
        opnd = jnp.pad(opnd, ((0, pad), (0, 0), (0, 0)))

    wmap = lambda b: (0, 0)          # weights: same block every step -> no re-DMA
    bmap = lambda b: (b, 0, 0)       # activations/outputs: one batch block per step

    outs = pl.pallas_call(
        _doctor_fused_kernel,
        grid=(nblk,),
        in_specs=[
            pl.BlockSpec((bb, T, D), bmap),               # dec_hidden
            pl.BlockSpec((bb, S, D), bmap),               # enc_hidden
            pl.BlockSpec((bb, P, D), bmap),               # opnd_embeddings (f32)
            pl.BlockSpec((D, 3 * D + n_ops), wmap),       # [Wq1|Wq2|Wq3|lm_w]
            pl.BlockSpec((1, 3 * D + n_ops), wmap),       # fused query bias (lm seg = 0)
            pl.BlockSpec((D, 2 * D), wmap),               # [Wk1|Wk2]
            pl.BlockSpec((1, 2 * D), wmap),               # fused operand-key bias
            pl.BlockSpec((D, D), wmap),                   # noun key weight
            pl.BlockSpec((1, D), wmap),                   # noun key bias
            pl.BlockSpec((1, D), wmap),                   # LN gamma
            pl.BlockSpec((1, D), wmap),                   # LN beta
        ],
        out_specs=[
            pl.BlockSpec((bb, T, n_ops), bmap),
            pl.BlockSpec((bb, T, P), bmap),
            pl.BlockSpec((bb, T, P), bmap),
            pl.BlockSpec((bb, T, S), bmap),
        ],
        out_shape=[
            jax.ShapeDtypeStruct((b_pad, T, n_ops), jnp.float32),
            jax.ShapeDtypeStruct((b_pad, T, P), jnp.float32),
            jax.ShapeDtypeStruct((b_pad, T, P), jnp.float32),
            jax.ShapeDtypeStruct((b_pad, T, S), jnp.float32),
        ],
        compiler_params=pltpu.CompilerParams(
            dimension_semantics=("parallel",),
            vmem_limit_bytes=32 * 1024 * 1024),
    )(dec, enc, opnd, *prep)

    lm, left, right, noun = outs
    if b_pad != B:
        lm, left, right, noun = lm[:B], left[:B], right[:B], noun[:B]
    # TODO(synk): T5 backbone, SmoothedCrossEntropyLoss / accuracy bookkeeping
    # and string-level decode/postprocess are not tensor kernels; omitted.
    return lm, left, right, noun


# --------------------------------------------------------------------------
# Pure-JAX reference for verification
# --------------------------------------------------------------------------
def _ref_forward(params, dec, enc, opnd):
    D = dec.shape[-1]
    scale = 1.0 / math.sqrt(D)
    lm_out = dec @ params["lm_w"]
    mu = jnp.mean(opnd, axis=-1, keepdims=True)
    var = jnp.mean((opnd - mu) ** 2, axis=-1, keepdims=True)
    opnd_ln = (opnd - mu) / jnp.sqrt(var + 1e-12) * params["ln_g"] + params["ln_b"]

    def head(x, y, wq, bq, wk, bk):
        q = (x @ wq + bq) * scale
        k = y @ wk + bk
        return jnp.einsum("btd,bsd->bts", q, k)

    left = head(dec, opnd_ln, params["opt1_w"], params["opt1_b"],
                params["opnd1_w"], params["opnd1_b"])
    right = head(dec, opnd_ln, params["opt2_w"], params["opt2_b"],
                 params["opnd2_w"], params["opnd2_b"])
    noun = head(dec, enc, params["q_w"], params["q_b"],
                params["k_w"], params["k_b"])
    return lm_out, left, right, noun


# --------------------------------------------------------------------------
# Main
# --------------------------------------------------------------------------
if __name__ == "__main__":
    # Small stand-in sizes (real model_size='small' would be d_model=512).
    # B=8 exercises the batched (BB>1) path with 2 parallel grid steps.
    B, T, S, P, D = 8, 8, 16, 8, 128   # batch, dec-seq, enc-seq, #operands, d_model
    N_OPS = 16                          # stand-in for len(OPERATOR_DICT)

    key = jax.random.PRNGKey(0)
    keys = jax.random.split(key, 20)

    def w(k, shape, s=0.02):
        return jax.random.normal(k, shape, jnp.float32) * s

    params = {
        "lm_w":    w(keys[0], (D, N_OPS)),
        "ln_g":    jnp.ones((D,), jnp.float32),
        "ln_b":    jnp.zeros((D,), jnp.float32),
        "opt1_w":  w(keys[1], (D, D)),  "opt1_b":  w(keys[2], (D,)),
        "opt2_w":  w(keys[3], (D, D)),  "opt2_b":  w(keys[4], (D,)),
        "opnd1_w": w(keys[5], (D, D)),  "opnd1_b": w(keys[6], (D,)),
        "opnd2_w": w(keys[7], (D, D)),  "opnd2_b": w(keys[8], (D,)),
        "q_w":     w(keys[9], (D, D)),  "q_b":     w(keys[10], (D,)),
        "k_w":     w(keys[11], (D, D)), "k_b":     w(keys[12], (D,)),
    }

    dec_hidden = jax.random.normal(keys[13], (B, T, D), jnp.float32)
    enc_hidden = jax.random.normal(keys[14], (B, S, D), jnp.float32)
    opnd_emb = jax.random.normal(keys[15], (B, P, D), jnp.float32)

    refs = _ref_forward(params, dec_hidden, enc_hidden, opnd_emb)

    # 1) f32 MXU inputs: strict numerical check against the reference.
    fwd_f32 = jax.jit(functools.partial(doctor_heads_forward,
                                        compute_dtype=jnp.float32))
    outs_f32 = jax.block_until_ready(
        fwd_f32(params, dec_hidden, enc_hidden, opnd_emb))
    for o, r in zip(outs_f32, refs):
        assert o.shape == r.shape, (o.shape, r.shape)
        assert jnp.allclose(o, r, rtol=1e-3, atol=1e-3)

    # 2) bf16 MXU inputs (default, halves HBM/VMEM traffic): looser tolerance.
    fwd_bf16 = jax.jit(functools.partial(doctor_heads_forward,
                                         compute_dtype=jnp.bfloat16))
    outs_bf16 = jax.block_until_ready(
        fwd_bf16(params, dec_hidden, enc_hidden, opnd_emb))
    for o, r in zip(outs_bf16, refs):
        assert o.shape == r.shape, (o.shape, r.shape)
        assert jnp.allclose(o, r, rtol=2e-2, atol=2e-2)

    print("KERNEL_OK")
</pallas_src>

<mosaic_0001>
module attributes {stable_mosaic.version = 11 : i64} {
  func.func @_doctor_fused_kernel(%arg0: i32, %arg1: memref<4x8x128xf32, #tpu.memory_space<vmem>>, %arg2: memref<4x16x128xf32, #tpu.memory_space<vmem>>, %arg3: memref<4x8x128xf32, #tpu.memory_space<vmem>>, %arg4: memref<128x400xf32, #tpu.memory_space<vmem>>, %arg5: memref<1x400xf32, #tpu.memory_space<vmem>>, %arg6: memref<128x256xf32, #tpu.memory_space<vmem>>, %arg7: memref<1x256xf32, #tpu.memory_space<vmem>>, %arg8: memref<128x128xf32, #tpu.memory_space<vmem>>, %arg9: memref<1x128xf32, #tpu.memory_space<vmem>>, %arg10: memref<1x128xf32, #tpu.memory_space<vmem>>, %arg11: memref<1x128xf32, #tpu.memory_space<vmem>>, %arg12: memref<4x8x16xf32, #tpu.memory_space<vmem>>, %arg13: memref<4x8x8xf32, #tpu.memory_space<vmem>>, %arg14: memref<4x8x8xf32, #tpu.memory_space<vmem>>, %arg15: memref<4x8x16xf32, #tpu.memory_space<vmem>>) attributes {dimension_semantics = [#tpu.dimension_semantics<parallel>], iteration_bounds = array<i64: 2>, scalar_prefetch = 0 : i64, scratch_operands = 0 : i64, tpu.core_type = #tpu.core_type<tc>, window_params = [{transform_indices = @transform_0, window_bounds = array<i64: 4, 8, 128>}, {transform_indices = @transform_1, window_bounds = array<i64: 4, 16, 128>}, {transform_indices = @transform_2, window_bounds = array<i64: 4, 8, 128>}, {pipeline_mode = #tpu.pipeline_mode<synchronous>, transform_indices = @transform_3, window_bounds = array<i64: 128, 400>}, {pipeline_mode = #tpu.pipeline_mode<synchronous>, transform_indices = @transform_4, window_bounds = array<i64: 1, 400>}, {pipeline_mode = #tpu.pipeline_mode<synchronous>, transform_indices = @transform_5, window_bounds = array<i64: 128, 256>}, {pipeline_mode = #tpu.pipeline_mode<synchronous>, transform_indices = @transform_6, window_bounds = array<i64: 1, 256>}, {pipeline_mode = #tpu.pipeline_mode<synchronous>, transform_indices = @transform_7, window_bounds = array<i64: 128, 128>}, {pipeline_mode = #tpu.pipeline_mode<synchronous>, transform_indices = @transform_8, window_bounds = array<i64: 1, 128>}, {pipeline_mode = #tpu.pipeline_mode<synchronous>, transform_indices = @transform_9, window_bounds = array<i64: 1, 128>}, {pipeline_mode = #tpu.pipeline_mode<synchronous>, transform_indices = @transform_10, window_bounds = array<i64: 1, 128>}, {transform_indices = @transform_11, window_bounds = array<i64: 4, 8, 16>}, {transform_indices = @transform_12, window_bounds = array<i64: 4, 8, 8>}, {transform_indices = @transform_13, window_bounds = array<i64: 4, 8, 8>}, {transform_indices = @transform_14, window_bounds = array<i64: 4, 8, 16>}]} {
    %c0 = arith.constant 0 : index
    %c0_0 = arith.constant 0 : index
    %c0_1 = arith.constant 0 : index
    %0 = vector.load %arg1[%c0, %c0_0, %c0_1] : memref<4x8x128xf32, #tpu.memory_space<vmem>>, vector<4x8x128xf32>
    %1 = vector.shape_cast %0 : vector<4x8x128xf32> to vector<32x128xf32>
    %c0_2 = arith.constant 0 : index
    %c0_3 = arith.constant 0 : index
    %c0_4 = arith.constant 0 : index
    %2 = vector.load %arg2[%c0_2, %c0_3, %c0_4] : memref<4x16x128xf32, #tpu.memory_space<vmem>>, vector<4x16x128xf32>
    %3 = vector.shape_cast %2 : vector<4x16x128xf32> to vector<64x128xf32>
    %c0_5 = arith.constant 0 : index
    %c0_6 = arith.constant 0 : index
    %c0_7 = arith.constant 0 : index
    %4 = vector.load %arg3[%c0_5, %c0_6, %c0_7] : memref<4x8x128xf32, #tpu.memory_space<vmem>>, vector<4x8x128xf32>
    %cst = arith.constant dense<0.000000e+00> : vector<4x8xf32>
    %5 = vector.multi_reduction <add>, %4, %cst [2] : vector<4x8x128xf32> to vector<4x8xf32>
    %6 = vector.shape_cast %5 : vector<4x8xf32> to vector<4x8x1xf32>
    %cst_8 = arith.constant 1.280000e+02 : f32
    %7 = vector.broadcast %cst_8 : f32 to vector<4x8x1xf32>
    %8 = arith.divf %6, %7 : vector<4x8x1xf32>
    %9 = vector.broadcast %8 : vector<4x8x1xf32> to vector<4x8x128xf32>
    %10 = arith.subf %4, %9 : vector<4x8x128xf32>
    %11 = arith.mulf %10, %10 : vector<4x8x128xf32>
    %cst_9 = arith.constant dense<0.000000e+00> : vector<4x8xf32>
    %12 = vector.multi_reduction <add>, %11, %cst_9 [2] : vector<4x8x128xf32> to vector<4x8xf32>
    %13 = vector.shape_cast %12 : vector<4x8xf32> to vector<4x8x1xf32>
    %cst_10 = arith.constant 1.280000e+02 : f32
    %14 = vector.broadcast %cst_10 : f32 to vector<4x8x1xf32>
    %15 = arith.divf %13, %14 : vector<4x8x1xf32>
    %cst_11 = arith.constant 9.99999996E-13 : f32
    %16 = vector.broadcast %cst_11 : f32 to vector<4x8x1xf32>
    %17 = arith.addf %15, %16 : vector<4x8x1xf32>
    %18 = math.rsqrt %17 : vector<4x8x1xf32>
    %19 = vector.broadcast %18 : vector<4x8x1xf32> to vector<4x8x128xf32>
    %20 = arith.mulf %10, %19 : vector<4x8x128xf32>
    %c0_12 = arith.constant 0 : index
    %c0_13 = arith.constant 0 : index
    %21 = vector.load %arg10[%c0_12, %c0_13] : memref<1x128xf32, #tpu.memory_space<vmem>>, vector<1x128xf32>
    %22 = vector.shape_cast %21 : vector<1x128xf32> to vector<1x1x128xf32>
    %23 = vector.broadcast %22 : vector<1x1x128xf32> to vector<4x8x128xf32>
    %24 = arith.mulf %20, %23 : vector<4x8x128xf32>
    %c0_14 = arith.constant 0 : index
    %c0_15 = arith.constant 0 : index
    %25 = vector.load %arg11[%c0_14, %c0_15] : memref<1x128xf32, #tpu.memory_space<vmem>>, vector<1x128xf32>
    %26 = vector.shape_cast %25 : vector<1x128xf32> to vector<1x1x128xf32>
    %27 = vector.broadcast %26 : vector<1x1x128xf32> to vector<4x8x128xf32>
    %28 = arith.addf %24, %27 : vector<4x8x128xf32>
    %29 = vector.shape_cast %28 : vector<4x8x128xf32> to vector<32x128xf32>
    %c0_16 = arith.constant 0 : index
    %c0_17 = arith.constant 0 : index
    %30 = vector.load %arg4[%c0_16, %c0_17] : memref<128x400xf32, #tpu.memory_space<vmem>>, vector<128x400xf32>
    %cst_18 = arith.constant dense<0.000000e+00> : vector<32x400xf32>
    %31 = tpu.matmul %1, %30, %cst_18 {dimension_numbers = #tpu.dot_dimension_numbers<[1], [0], [0], [1], [0, 0, 1, 1], [], []>} : vector<32x128xf32>, vector<128x400xf32>, vector<32x400xf32> -> vector<32x400xf32>
    %c0_19 = arith.constant 0 : index
    %c0_20 = arith.constant 0 : index
    %32 = vector.load %arg5[%c0_19, %c0_20] : memref<1x400xf32, #tpu.memory_space<vmem>>, vector<1x400xf32>
    %33 = vector.broadcast %32 : vector<1x400xf32> to vector<32x400xf32>
    %34 = arith.addf %31, %33 : vector<32x400xf32>
    %c0_21 = arith.constant 0 : index
    %c0_22 = arith.constant 0 : index
    %35 = vector.load %arg6[%c0_21, %c0_22] : memref<128x256xf32, #tpu.memory_space<vmem>>, vector<128x256xf32>
    %cst_23 = arith.constant dense<0.000000e+00> : vector<32x256xf32>
    %36 = tpu.matmul %29, %35, %cst_23 {dimension_numbers = #tpu.dot_dimension_numbers<[1], [0], [0], [1], [0, 0, 1, 1], [], []>} : vector<32x128xf32>, vector<128x256xf32>, vector<32x256xf32> -> vector<32x256xf32>
    %c0_24 = arith.constant 0 : index
    %c0_25 = arith.constant 0 : index
    %37 = vector.load %arg7[%c0_24, %c0_25] : memref<1x256xf32, #tpu.memory_space<vmem>>, vector<1x256xf32>
    %38 = vector.broadcast %37 : vector<1x256xf32> to vector<32x256xf32>
    %39 = arith.addf %36, %38 : vector<32x256xf32>
    %c0_26 = arith.constant 0 : index
    %c0_27 = arith.constant 0 : index
    %40 = vector.load %arg8[%c0_26, %c0_27] : memref<128x128xf32, #tpu.memory_space<vmem>>, vector<128x128xf32>
    %cst_28 = arith.constant dense<0.000000e+00> : vector<64x128xf32>
    %41 = tpu.matmul %3, %40, %cst_28 {dimension_numbers = #tpu.dot_dimension_numbers<[1], [0], [0], [1], [0, 0, 1, 1], [], []>} : vector<64x128xf32>, vector<128x128xf32>, vector<64x128xf32> -> vector<64x128xf32>
    %c0_29 = arith.constant 0 : index
    %c0_30 = arith.constant 0 : index
    %42 = vector.load %arg9[%c0_29, %c0_30] : memref<1x128xf32, #tpu.memory_space<vmem>>, vector<1x128xf32>
    %43 = vector.broadcast %42 : vector<1x128xf32> to vector<64x128xf32>
    %44 = arith.addf %41, %43 : vector<64x128xf32>
    %45 = vector.extract_strided_slice %34 {offsets = [0, 384], sizes = [32, 16], strides = [1, 1]} : vector<32x400xf32> to vector<32x16xf32>
    %46 = vector.shape_cast %45 : vector<32x16xf32> to vector<4x8x16xf32>
    %c0_31 = arith.constant 0 : index
    %c0_32 = arith.constant 0 : index
    %c0_33 = arith.constant 0 : index
    %47 = vector.load %arg12[%c0_31, %c0_32, %c0_33] : memref<4x8x16xf32, #tpu.memory_space<vmem>>, vector<4x8x16xf32>
    tpu.vector_store %arg12[%c0_31, %c0_32, %c0_33], %46 {strides = array<i32>} : memref<4x8x16xf32, #tpu.memory_space<vmem>>, vector<4x8x16xf32>,
    %48 = vector.extract_strided_slice %34 {offsets = [0, 0], sizes = [32, 128], strides = [1, 1]} : vector<32x400xf32> to vector<32x128xf32>
    %49 = vector.shape_cast %48 : vector<32x128xf32> to vector<4x8x128xf32>
    %50 = vector.extract_strided_slice %34 {offsets = [0, 128], sizes = [32, 128], strides = [1, 1]} : vector<32x400xf32> to vector<32x128xf32>
    %51 = vector.shape_cast %50 : vector<32x128xf32> to vector<4x8x128xf32>
    %52 = vector.extract_strided_slice %34 {offsets = [0, 256], sizes = [32, 128], strides = [1, 1]} : vector<32x400xf32> to vector<32x128xf32>
    %53 = vector.shape_cast %52 : vector<32x128xf32> to vector<4x8x128xf32>
    %54 = vector.extract_strided_slice %39 {offsets = [0, 0], sizes = [32, 128], strides = [1, 1]} : vector<32x256xf32> to vector<32x128xf32>
    %55 = vector.shape_cast %54 : vector<32x128xf32> to vector<4x8x128xf32>
    %56 = vector.extract_strided_slice %39 {offsets = [0, 128], sizes = [32, 128], strides = [1, 1]} : vector<32x256xf32> to vector<32x128xf32>
    %57 = vector.shape_cast %56 : vector<32x128xf32> to vector<4x8x128xf32>
    %58 = vector.shape_cast %44 : vector<64x128xf32> to vector<4x16x128xf32>
    "tpu.trace_start"() <{level = 10 : i32, message = "btd,bpd->btp"}> : () -> ()
    %cst_34 = arith.constant dense<0.000000e+00> : vector<4x8x8xf32>
    %59 = tpu.matmul %49, %55, %cst_34 {dimension_numbers = #tpu.dot_dimension_numbers<[2], [2], [1], [1], [0, 0, 0, 1, 1, 1], [0], [0]>} : vector<4x8x128xf32>, vector<4x8x128xf32>, vector<4x8x8xf32> -> vector<4x8x8xf32>
    "tpu.trace_stop"() : () -> ()
    %c0_35 = arith.constant 0 : index
    %c0_36 = arith.constant 0 : index
    %c0_37 = arith.constant 0 : index
    %60 = vector.load %arg13[%c0_35, %c0_36, %c0_37] : memref<4x8x8xf32, #tpu.memory_space<vmem>>, vector<4x8x8xf32>
    tpu.vector_store %arg13[%c0_35, %c0_36, %c0_37], %59 {strides = array<i32>} : memref<4x8x8xf32, #tpu.memory_space<vmem>>, vector<4x8x8xf32>,
    "tpu.trace_start"() <{level = 10 : i32, message = "btd,bpd->btp"}> : () -> ()
    %cst_38 = arith.constant dense<0.000000e+00> : vector<4x8x8xf32>
    %61 = tpu.matmul %51, %57, %cst_38 {dimension_numbers = #tpu.dot_dimension_numbers<[2], [2], [1], [1], [0, 0, 0, 1, 1, 1], [0], [0]>} : vector<4x8x128xf32>, vector<4x8x128xf32>, vector<4x8x8xf32> -> vector<4x8x8xf32>
    "tpu.trace_stop"() : () -> ()
    %c0_39 = arith.constant 0 : index
    %c0_40 = arith.constant 0 : index
    %c0_41 = arith.constant 0 : index
    %62 = vector.load %arg14[%c0_39, %c0_40, %c0_41] : memref<4x8x8xf32, #tpu.memory_space<vmem>>, vector<4x8x8xf32>
    tpu.vector_store %arg14[%c0_39, %c0_40, %c0_41], %61 {strides = array<i32>} : memref<4x8x8xf32, #tpu.memory_space<vmem>>, vector<4x8x8xf32>,
    "tpu.trace_start"() <{level = 10 : i32, message = "btd,bsd->bts"}> : () -> ()
    %cst_42 = arith.constant dense<0.000000e+00> : vector<4x8x16xf32>
    %63 = tpu.matmul %53, %58, %cst_42 {dimension_numbers = #tpu.dot_dimension_numbers<[2], [2], [1], [1], [0, 0, 0, 1, 1, 1], [0], [0]>} : vector<4x8x128xf32>, vector<4x16x128xf32>, vector<4x8x16xf32> -> vector<4x8x16xf32>
    "tpu.trace_stop"() : () -> ()
    %c0_43 = arith.constant 0 : index
    %c0_44 = arith.constant 0 : index
    %c0_45 = arith.constant 0 : index
    %64 = vector.load %arg15[%c0_43, %c0_44, %c0_45] : memref<4x8x16xf32, #tpu.memory_space<vmem>>, vector<4x8x16xf32>
    tpu.vector_store %arg15[%c0_43, %c0_44, %c0_45], %63 {strides = array<i32>} : memref<4x8x16xf32, #tpu.memory_space<vmem>>, vector<4x8x16xf32>,
    return
  }
  func.func @transform_0(%arg0: i32) -> (i32, i32, i32) {
    %c0_i32 = arith.constant 0 : i32
    %c0_i32_0 = arith.constant 0 : i32
    %c0_i32_1 = arith.constant 0 : i32
    return %arg0, %c0_i32, %c0_i32_0 : i32, i32, i32
  }
  func.func @transform_1(%arg0: i32) -> (i32, i32, i32) {
    %c0_i32 = arith.constant 0 : i32
    %c0_i32_0 = arith.constant 0 : i32
    %c0_i32_1 = arith.constant 0 : i32
    return %arg0, %c0_i32, %c0_i32_0 : i32, i32, i32
  }
  func.func @transform_2(%arg0: i32) -> (i32, i32, i32) {
    %c0_i32 = arith.constant 0 : i32
    %c0_i32_0 = arith.constant 0 : i32
    %c0_i32_1 = arith.constant 0 : i32
    return %arg0, %c0_i32, %c0_i32_0 : i32, i32, i32
  }
  func.func @transform_3(%arg0: i32) -> (i32, i32) {
    %c0_i32 = arith.constant 0 : i32
    %c0_i32_0 = arith.constant 0 : i32
    %c0_i32_1 = arith.constant 0 : i32
    return %c0_i32, %c0_i32_0 : i32, i32
  }
  func.func @transform_4(%arg0: i32) -> (i32, i32) {
    %c0_i32 = arith.constant 0 : i32
    %c0_i32_0 = arith.constant 0 : i32
    %c0_i32_1 = arith.constant 0 : i32
    return %c0_i32, %c0_i32_0 : i32, i32
  }
  func.func @transform_5(%arg0: i32) -> (i32, i32) {
    %c0_i32 = arith.constant 0 : i32
    %c0_i32_0 = arith.constant 0 : i32
    %c0_i32_1 = arith.constant 0 : i32
    return %c0_i32, %c0_i32_0 : i32, i32
  }
  func.func @transform_6(%arg0: i32) -> (i32, i32) {
    %c0_i32 = arith.constant 0 : i32
    %c0_i32_0 = arith.constant 0 : i32
    %c0_i32_1 = arith.constant 0 : i32
    return %c0_i32, %c0_i32_0 : i32, i32
  }
  func.func @transform_7(%arg0: i32) -> (i32, i32) {
    %c0_i32 = arith.constant 0 : i32
    %c0_i32_0 = arith.constant 0 : i32
    %c0_i32_1 = arith.constant 0 : i32
    return %c0_i32, %c0_i32_0 : i32, i32
  }
  func.func @transform_8(%arg0: i32) -> (i32, i32) {
    %c0_i32 = arith.constant 0 : i32
    %c0_i32_0 = arith.constant 0 : i32
    %c0_i32_1 = arith.constant 0 : i32
    return %c0_i32, %c0_i32_0 : i32, i32
  }
  func.func @transform_9(%arg0: i32) -> (i32, i32) {
    %c0_i32 = arith.constant 0 : i32
    %c0_i32_0 = arith.constant 0 : i32
    %c0_i32_1 = arith.constant 0 : i32
    return %c0_i32, %c0_i32_0 : i32, i32
  }
  func.func @transform_10(%arg0: i32) -> (i32, i32) {
    %c0_i32 = arith.constant 0 : i32
    %c0_i32_0 = arith.constant 0 : i32
    %c0_i32_1 = arith.constant 0 : i32
    return %c0_i32, %c0_i32_0 : i32, i32
  }
  func.func @transform_11(%arg0: i32) -> (i32, i32, i32) {
    %c0_i32 = arith.constant 0 : i32
    %c0_i32_0 = arith.constant 0 : i32
    %c0_i32_1 = arith.constant 0 : i32
    return %arg0, %c0_i32, %c0_i32_0 : i32, i32, i32
  }
  func.func @transform_12(%arg0: i32) -> (i32, i32, i32) {
    %c0_i32 = arith.constant 0 : i32
    %c0_i32_0 = arith.constant 0 : i32
    %c0_i32_1 = arith.constant 0 : i32
    return %arg0, %c0_i32, %c0_i32_0 : i32, i32, i32
  }
  func.func @transform_13(%arg0: i32) -> (i32, i32, i32) {
    %c0_i32 = arith.constant 0 : i32
    %c0_i32_0 = arith.constant 0 : i32
    %c0_i32_1 = arith.constant 0 : i32
    return %arg0, %c0_i32, %c0_i32_0 : i32, i32, i32
  }
  func.func @transform_14(%arg0: i32) -> (i32, i32, i32) {
    %c0_i32 = arith.constant 0 : i32
    %c0_i32_0 = arith.constant 0 : i32
    %c0_i32_1 = arith.constant 0 : i32
    return %arg0, %c0_i32, %c0_i32_0 : i32, i32, i32
  }
}

</mosaic_0001>

<llo_original>
// kernel: doctor_heads_forward.1
$region0: #{doctor_heads_forward.1}
  #allocation0 [shape = 'u32[]', space=smem, size = 0x4, offset = 0x4, fixed_abs, tag = 'smem constant byte address 0x4 - core index']
  #allocation1 [shape = 'u32[144,128]{1,0:T(1,128)}', space=vmem, size = 0x12000, scoped, tag = 'internal scratch']
  %s0 = inlined_call_operand.vmem [shape: f32[8,8,128], index: 0, kind: input, shape index: {}]
  %s1 = inlined_call_operand.vmem [shape: f32[8,16,128], index: 1, kind: input, shape index: {}]
  %s2 = inlined_call_operand.vmem [shape: f32[8,8,128], index: 2, kind: input, shape index: {}]
  %s3 = inlined_call_operand.vmem [shape: f32[128,400], index: 3, kind: input, shape index: {}]
  %s4 = inlined_call_operand.vmem [shape: f32[1,400], index: 4, kind: input, shape index: {}]
  %s5 = inlined_call_operand.vmem [shape: f32[128,256], index: 5, kind: input, shape index: {}]
  %s6 = inlined_call_operand.vmem [shape: f32[1,256], index: 6, kind: input, shape index: {}]
  %s7 = inlined_call_operand.vmem [shape: f32[128,128], index: 7, kind: input, shape index: {}]
  %s8 = inlined_call_operand.vmem [shape: f32[1,128], index: 8, kind: input, shape index: {}]
  %s9 = inlined_call_operand.vmem [shape: f32[1,128], index: 9, kind: input, shape index: {}]
  %s10 = inlined_call_operand.vmem [shape: f32[1,128], index: 10, kind: input, shape index: {}]
  %s11 = inlined_call_operand.hbm [shape: f32[8,8,16], index: 11, kind: output, shape index: {0}]
  %s12 = inlined_call_operand.hbm [shape: f32[8,8,8], index: 12, kind: output, shape index: {1}]
  %s13 = inlined_call_operand.hbm [shape: f32[8,8,8], index: 13, kind: output, shape index: {2}]
  %s14 = inlined_call_operand.hbm [shape: f32[8,8,16], index: 14, kind: output, shape index: {3}]
  %15 = xla_tuple %s11, %s12, %s13, %s14
  %s16 = sld [smem:[#allocation0]]
  $region101: #{doctor_heads_forward.1} parent=0
    _
  %s18 = ssub.s32 1, %s16
  %s19 = scalar_select 0, %s18, %s16
  $region1: #{doctor_heads_forward.1} parent=0
    #allocation2 [shape = 'u8[32768]{0}', space=vmem, size = 0x8000, scoped, tag = 'output window, operand 0']
    #allocation3 [shape = 's32[2]{0}', space=sflag, size = 0x8, scoped, tag = 'scoped memory for doctor_heads_forward.1']
    #allocation4 [shape = 'u8[32768]{0}', space=vmem, size = 0x8000, scoped, tag = 'output window, operand 1']
    #allocation5 [shape = 's32[2]{0}', space=sflag, size = 0x8, scoped, tag = 'scoped memory for doctor_heads_forward.1']
    #allocation6 [shape = 'u8[32768]{0}', space=vmem, size = 0x8000, scoped, tag = 'output window, operand 2']
    #allocation7 [shape = 'u8[32768]{0}', space=vmem, size = 0x8000, scoped, tag = 'output window, operand 3']
    #allocation8 [shape = 's32[2]{0}', space=sflag, size = 0x8, scoped, tag = 'scoped memory for doctor_heads_forward.1']
    %20 = vsyncpa [#allocation3], 0
    %s21 = scalar_lea.sflag [#allocation3], 1
    %22 = vsyncpa %s21, 0
    %23 = vsyncpa [#allocation5], 0
    %s24 = scalar_lea.sflag [#allocation5], 1
    %25 = vsyncpa %s24, 0
    %26 = vsyncpa [#allocation8], 0
    %s27 = scalar_lea.sflag [#allocation8], 1
    %28 = vsyncpa %s27, 0
    loop: start=0, step=1, limit=4
    $region2: #{doctor_heads_forward.1} parent=1 // loop_pre_header
      _
    $region3: #{doctor_heads_forward.1} parent=1 // loop_header
      %s30 = sphi 0, %s34
      %p31 = scmp.ge.s32.totalorder %s30, 4
      %s40 = sphi 0, %s42
      %s43 = sphi 0, %s40
      %s44 = sphi 0, %s43
      %s60 = sphi 0, %s44
      %s66 = sphi 0, %s68
      %s69 = sphi 0, %s66
      %s70 = sphi 0, %s69
      %s86 = sphi 0, %s70
      %s92 = sphi 0, %s94
      %s95 = sphi 0, %s92
      %s96 = sphi 0, %s95
      %s112 = sphi 0, %s96
      %s116 = sphi 0, %s116
      %s118 = sphi 0, %s116
      %s119 = sphi 0, %s118
      %s133 = sphi 0, %s119
      %s137 = sphi 0, %s137
      %s139 = sphi 0, %s137
      %s140 = sphi 0, %s139
      %s154 = sphi 0, %s140
      %s158 = sphi 0, %s158
      %s160 = sphi 0, %s158
      %s161 = sphi 0, %s160
      %s175 = sphi 0, %s161
      %s179 = sphi 0, %s179
      %s181 = sphi 0, %s179
      %s182 = sphi 0, %s181
      %s196 = sphi 0, %s182
      %s200 = sphi 0, %s200
      %s202 = sphi 0, %s200
      %s203 = sphi 0, %s202
      %s217 = sphi 0, %s203
      %s221 = sphi 0, %s221
      %s223 = sphi 0, %s221
      %s224 = sphi 0, %s223
      %s238 = sphi 0, %s224
      %s242 = sphi 0, %s242
      %s244 = sphi 0, %s242
      %s245 = sphi 0, %s244
      %s259 = sphi 0, %s245
      %s263 = sphi 0, %s263
      %s265 = sphi 0, %s263
      %s266 = sphi 0, %s265
      %s280 = sphi 0, %s266
      %s286 = sphi 0, %s288
      %s289 = sphi 0, %s286
      %s290 = sphi 0, %s289
      %s306 = sphi 0, %s290
      %s312 = sphi 0, %s314
      %s315 = sphi 0, %s312
      %s316 = sphi 0, %s315
      %s332 = sphi 0, %s316
      %s338 = sphi 0, %s340
      %s341 = sphi 0, %s338
      %s342 = sphi 0, %s341
      %s358 = sphi 0, %s342
      %s364 = sphi 0, %s366
      %s367 = sphi 0, %s364
      %s368 = sphi 0, %s367
      %s384 = sphi 0, %s368
    $region4: #{doctor_heads_forward.1} parent=1 // loop_header_branch
      %33 = sbr.rel (%p31) target = $region8
    $region5: #{doctor_heads_forward.1} parent=1 // loop_body
      %s35 = ssub.s32 %s30, 1
      %s36 = ssub.s32 %s30, 2
      %s37 = sadd.s32 %s30, 1
      %s38 = ssub.s32 %s30, %s37
      %p39 = scmp.eq.s32.totalorder %s38, 0
      %s41 = sadd.s32 %s40, 1
      %s42 = scalar_select %p39, %s40, %s41
      %p45 = pneg %p39
      %p46 = scmp.eq.s32.totalorder %s30, 1
      %p47 = por %p45, %p46
      %p48 = scmp.ne.s32.totalorder %s40, %s43
      %p49 = scmp.eq.s32.totalorder %s30, 0
      %p50 = por %p48, %p49
      %p51 = scmp.ne.s32.totalorder %s40, %s43
      %p52 = scmp.eq.s32.totalorder %s35, 1
      %p53 = por %p51, %p52
      %p54 = scmp.ne.s32.totalorder %s43, %s44
      %p55 = scmp.eq.s32.totalorder %s35, 0
      %p56 = por %p54, %p55
      %p57 = scmp.ne.s32.totalorder %s43, %s44
      %p58 = scmp.eq.s32.totalorder %s36, 1
      %p59 = por %p57, %p58
      %p61 = scmp.ne.s32.totalorder %s44, %s60
      %p62 = scmp.eq.s32.totalorder %s36, 0
      %p63 = por %p61, %p62
      %s64 = ssub.s32 %s30, %s37
      %p65 = scmp.eq.s32.totalorder %s64, 0
      %s67 = sadd.s32 %s66, 1
      %s68 = scalar_select %p65, %s66, %s67
      %p71 = pneg %p65
      %p72 = scmp.eq.s32.totalorder %s30, 1
      %p73 = por %p71, %p72
      %p74 = scmp.ne.s32.totalorder %s66, %s69
      %p75 = scmp.eq.s32.totalorder %s30, 0
      %p76 = por %p74, %p75
      %p77 = scmp.ne.s32.totalorder %s66, %s69
      %p78 = scmp.eq.s32.totalorder %s35, 1
      %p79 = por %p77, %p78
      %p80 = scmp.ne.s32.totalorder %s69, %s70
      %p81 = scmp.eq.s32.totalorder %s35, 0
      %p82 = por %p80, %p81
      %p83 = scmp.ne.s32.totalorder %s69, %s70
      %p84 = scmp.eq.s32.totalorder %s36, 1
      %p85 = por %p83, %p84
      %p87 = scmp.ne.s32.totalorder %s70, %s86
      %p88 = scmp.eq.s32.totalorder %s36, 0
      %p89 = por %p87, %p88
      %s90 = ssub.s32 %s30, %s37
      %p91 = scmp.eq.s32.totalorder %s90, 0
      %s93 = sadd.s32 %s92, 1
      %s94 = scalar_select %p91, %s92, %s93
      %p97 = pneg %p91
      %p98 = scmp.eq.s32.totalorder %s30, 1
      %p99 = por %p97, %p98
      %p100 = scmp.ne.s32.totalorder %s92, %s95
      %p101 = scmp.eq.s32.totalorder %s30, 0
      %p102 = por %p100, %p101
      %p103 = scmp.ne.s32.totalorder %s92, %s95
      %p104 = scmp.eq.s32.totalorder %s35, 1
      %p105 = por %p103, %p104
      %p106 = scmp.ne.s32.totalorder %s95, %s96
      %p107 = scmp.eq.s32.totalorder %s35, 0
      %p108 = por %p106, %p107
      %p109 = scmp.ne.s32.totalorder %s95, %s96
      %p110 = scmp.eq.s32.totalorder %s36, 1
      %p111 = por %p109, %p110
      %p113 = scmp.ne.s32.totalorder %s96, %s112
      %p114 = scmp.eq.s32.totalorder %s36, 0
      %p115 = por %p113, %p114
      %s117 = sadd.s32 %s116, 1
      %p120 = scmp.eq.s32.totalorder %s30, 1
      %p121 = scmp.ne.s32.totalorder %s116, %s118
      %p122 = scmp.eq.s32.totalorder %s30, 0
      %p123 = por %p121, %p122
      %p124 = scmp.ne.s32.totalorder %s116, %s118
      %p125 = scmp.eq.s32.totalorder %s35, 1
      %p126 = por %p124, %p125
      %p127 = scmp.ne.s32.totalorder %s118, %s119
      %p128 = scmp.eq.s32.totalorder %s35, 0
      %p129 = por %p127, %p128
      %p130 = scmp.ne.s32.totalorder %s118, %s119
      %p131 = scmp.eq.s32.totalorder %s36, 1
      %p132 = por %p130, %p131
      %p134 = scmp.ne.s32.totalorder %s119, %s133
      %p135 = scmp.eq.s32.totalorder %s36, 0
      %p136 = por %p134, %p135
      %s138 = sadd.s32 %s137, 1
      %p141 = scmp.eq.s32.totalorder %s30, 1
      %p142 = scmp.ne.s32.totalorder %s137, %s139
      %p143 = scmp.eq.s32.totalorder %s30, 0
      %p144 = por %p142, %p143
      %p145 = scmp.ne.s32.totalorder %s137, %s139
      %p146 = scmp.eq.s32.totalorder %s35, 1
      %p147 = por %p145, %p146
      %p148 = scmp.ne.s32.totalorder %s139, %s140
      %p149 = scmp.eq.s32.totalorder %s35, 0
      %p150 = por %p148, %p149
      %p151 = scmp.ne.s32.totalorder %s139, %s140
      %p152 = scmp.eq.s32.totalorder %s36, 1
      %p153 = por %p151, %p152
      %p155 = scmp.ne.s32.totalorder %s140, %s154
      %p156 = scmp.eq.s32.totalorder %s36, 0
      %p157 = por %p155, %p156
      %s159 = sadd.s32 %s158, 1
      %p162 = scmp.eq.s32.totalorder %s30, 1
      %p163 = scmp.ne.s32.totalorder %s158, %s160
      %p164 = scmp.eq.s32.totalorder %s30, 0
      %p165 = por %p163, %p164
      %p166 = scmp.ne.s32.totalorder %s158, %s160
      %p167 = scmp.eq.s32.totalorder %s35, 1
      %p168 = por %p166, %p167
      %p169 = scmp.ne.s32.totalorder %s160, %s161
      %p170 = scmp.eq.s32.totalorder %s35, 0
      %p171 = por %p169, %p170
      %p172 = scmp.ne.s32.totalorder %s160, %s161
      %p173 = scmp.eq.s32.totalorder %s36, 1
      %p174 = por %p172, %p173
      %p176 = scmp.ne.s32.totalorder %s161, %s175
      %p177 = scmp.eq.s32.totalorder %s36, 0
      %p178 = por %p176, %p177
      %s180 = sadd.s32 %s179, 1
      %p183 = scmp.eq.s32.totalorder %s30, 1
      %p184 = scmp.ne.s32.totalorder %s179, %s181
      %p185 = scmp.eq.s32.totalorder %s30, 0
      %p186 = por %p184, %p185
      %p187 = scmp.ne.s32.totalorder %s179, %s181
      %p188 = scmp.eq.s32.totalorder %s35, 1
      %p189 = por %p187, %p188
      %p190 = scmp.ne.s32.totalorder %s181, %s182
      %p191 = scmp.eq.s32.totalorder %s35, 0
      %p192 = por %p190, %p191
      %p193 = scmp.ne.s32.totalorder %s181, %s182
      %p194 = scmp.eq.s32.totalorder %s36, 1
      %p195 = por %p193, %p194
      %p197 = scmp.ne.s32.totalorder %s182, %s196
      %p198 = scmp.eq.s32.totalorder %s36, 0
      %p199 = por %p197, %p198
      %s201 = sadd.s32 %s200, 1
      %p204 = scmp.eq.s32.totalorder %s30, 1
      %p205 = scmp.ne.s32.totalorder %s200, %s202
      %p206 = scmp.eq.s32.totalorder %s30, 0
      %p207 = por %p205, %p206
      %p208 = scmp.ne.s32.totalorder %s200, %s202
      %p209 = scmp.eq.s32.totalorder %s35, 1
      %p210 = por %p208, %p209
      %p211 = scmp.ne.s32.totalorder %s202, %s203
      %p212 = scmp.eq.s32.totalorder %s35, 0
      %p213 = por %p211, %p212
      %p214 = scmp.ne.s32.totalorder %s202, %s203
      %p215 = scmp.eq.s32.totalorder %s36, 1
      %p216 = por %p214, %p215
      %p218 = scmp.ne.s32.totalorder %s203, %s217
      %p219 = scmp.eq.s32.totalorder %s36, 0
      %p220 = por %p218, %p219
      %s222 = sadd.s32 %s221, 1
      %p225 = scmp.eq.s32.totalorder %s30, 1
      %p226 = scmp.ne.s32.totalorder %s221, %s223
      %p227 = scmp.eq.s32.totalorder %s30, 0
      %p228 = por %p226, %p227
      %p229 = scmp.ne.s32.totalorder %s221, %s223
      %p230 = scmp.eq.s32.totalorder %s35, 1
      %p231 = por %p229, %p230
      %p232 = scmp.ne.s32.totalorder %s223, %s224
      %p233 = scmp.eq.s32.totalorder %s35, 0
      %p234 = por %p232, %p233
      %p235 = scmp.ne.s32.totalorder %s223, %s224
      %p236 = scmp.eq.s32.totalorder %s36, 1
      %p237 = por %p235, %p236
      %p239 = scmp.ne.s32.totalorder %s224, %s238
      %p240 = scmp.eq.s32.totalorder %s36, 0
      %p241 = por %p239, %p240
      %s243 = sadd.s32 %s242, 1
      %p246 = scmp.eq.s32.totalorder %s30, 1
      %p247 = scmp.ne.s32.totalorder %s242, %s244
      %p248 = scmp.eq.s32.totalorder %s30, 0
      %p249 = por %p247, %p248
      %p250 = scmp.ne.s32.totalorder %s242, %s244
      %p251 = scmp.eq.s32.totalorder %s35, 1
      %p252 = por %p250, %p251
      %p253 = scmp.ne.s32.totalorder %s244, %s245
      %p254 = scmp.eq.s32.totalorder %s35, 0
      %p255 = por %p253, %p254
      %p256 = scmp.ne.s32.totalorder %s244, %s245
      %p257 = scmp.eq.s32.totalorder %s36, 1
      %p258 = por %p256, %p257
      %p260 = scmp.ne.s32.totalorder %s245, %s259
      %p261 = scmp.eq.s32.totalorder %s36, 0
      %p262 = por %p260, %p261
      %s264 = sadd.s32 %s263, 1
      %p267 = scmp.eq.s32.totalorder %s30, 1
      %p268 = scmp.ne.s32.totalorder %s263, %s265
      %p269 = scmp.eq.s32.totalorder %s30, 0
      %p270 = por %p268, %p269
      %p271 = scmp.ne.s32.totalorder %s263, %s265
      %p272 = scmp.eq.s32.totalorder %s35, 1
      %p273 = por %p271, %p272
      %p274 = scmp.ne.s32.totalorder %s265, %s266
      %p275 = scmp.eq.s32.totalorder %s35, 0
      %p276 = por %p274, %p275
      %p277 = scmp.ne.s32.totalorder %s265, %s266
      %p278 = scmp.eq.s32.totalorder %s36, 1
      %p279 = por %p277, %p278
      %p281 = scmp.ne.s32.totalorder %s266, %s280
      %p282 = scmp.eq.s32.totalorder %s36, 0
      %p283 = por %p281, %p282
      %s284 = ssub.s32 %s30, %s37
      %p285 = scmp.eq.s32.totalorder %s284, 0
      %s287 = sadd.s32 %s286, 1
      %s288 = scalar_select %p285, %s286, %s287
      %p291 = pneg %p285
      %p292 = scmp.eq.s32.totalorder %s30, 1
      %p293 = por %p291, %p292
      %p294 = scmp.ne.s32.totalorder %s286, %s289
      %p295 = scmp.eq.s32.totalorder %s30, 0
      %p296 = por %p294, %p295
      %p297 = scmp.ne.s32.totalorder %s286, %s289
      %p298 = scmp.eq.s32.totalorder %s35, 1
      %p299 = por %p297, %p298
      %p300 = scmp.ne.s32.totalorder %s289, %s290
      %p301 = scmp.eq.s32.totalorder %s35, 0
      %p302 = por %p300, %p301
      %p303 = scmp.ne.s32.totalorder %s289, %s290
      %p304 = scmp.eq.s32.totalorder %s36, 1
      %p305 = por %p303, %p304
      %p307 = scmp.ne.s32.totalorder %s290, %s306
      %p308 = scmp.eq.s32.totalorder %s36, 0
      %p309 = por %p307, %p308
      %s310 = ssub.s32 %s30, %s37
      %p311 = scmp.eq.s32.totalorder %s310, 0
      %s313 = sadd.s32 %s312, 1
      %s314 = scalar_select %p311, %s312, %s313
      %p317 = pneg %p311
      %p318 = scmp.eq.s32.totalorder %s30, 1
      %p319 = por %p317, %p318
      %p320 = scmp.ne.s32.totalorder %s312, %s315
      %p321 = scmp.eq.s32.totalorder %s30, 0
      %p322 = por %p320, %p321
      %p323 = scmp.ne.s32.totalorder %s312, %s315
      %p324 = scmp.eq.s32.totalorder %s35, 1
      %p325 = por %p323, %p324
      %p326 = scmp.ne.s32.totalorder %s315, %s316
      %p327 = scmp.eq.s32.totalorder %s35, 0
      %p328 = por %p326, %p327
      %p329 = scmp.ne.s32.totalorder %s315, %s316
      %p330 = scmp.eq.s32.totalorder %s36, 1
      %p331 = por %p329, %p330
      %p333 = scmp.ne.s32.totalorder %s316, %s332
      %p334 = scmp.eq.s32.totalorder %s36, 0
      %p335 = por %p333, %p334
      %s336 = ssub.s32 %s30, %s37
      %p337 = scmp.eq.s32.totalorder %s336, 0
      %s339 = sadd.s32 %s338, 1
      %s340 = scalar_select %p337, %s338, %s339
      %p343 = pneg %p337
      %p344 = scmp.eq.s32.totalorder %s30, 1
      %p345 = por %p343, %p344
      %p346 = scmp.ne.s32.totalorder %s338, %s341
      %p347 = scmp.eq.s32.totalorder %s30, 0
      %p348 = por %p346, %p347
      %p349 = scmp.ne.s32.totalorder %s338, %s341
      %p350 = scmp.eq.s32.totalorder %s35, 1
      %p351 = por %p349, %p350
      %p352 = scmp.ne.s32.totalorder %s341, %s342
      %p353 = scmp.eq.s32.totalorder %s35, 0
      %p354 = por %p352, %p353
      %p355 = scmp.ne.s32.totalorder %s341, %s342
      %p356 = scmp.eq.s32.totalorder %s36, 1
      %p357 = por %p355, %p356
      %p359 = scmp.ne.s32.totalorder %s342, %s358
      %p360 = scmp.eq.s32.totalorder %s36, 0
      %p361 = por %p359, %p360
      %s362 = ssub.s32 %s30, %s37
      %p363 = scmp.eq.s32.totalorder %s362, 0
      %s365 = sadd.s32 %s364, 1
      %s366 = scalar_select %p363, %s364, %s365
      %p369 = pneg %p363
      %p370 = scmp.eq.s32.totalorder %s30, 1
      %p371 = por %p369, %p370
      %p372 = scmp.ne.s32.totalorder %s364, %s367
      %p373 = scmp.eq.s32.totalorder %s30, 0
      %p374 = por %p372, %p373
      %p375 = scmp.ne.s32.totalorder %s364, %s367
      %p376 = scmp.eq.s32.totalorder %s35, 1
      %p377 = por %p375, %p376
      %p378 = scmp.ne.s32.totalorder %s367, %s368
      %p379 = scmp.eq.s32.totalorder %s35, 0
      %p380 = por %p378, %p379
      %p381 = scmp.ne.s32.totalorder %s367, %s368
      %p382 = scmp.eq.s32.totalorder %s36, 1
      %p383 = por %p381, %p382
      %p385 = scmp.ne.s32.totalorder %s368, %s384
      %p386 = scmp.eq.s32.totalorder %s36, 0
      %p387 = por %p385, %p386
      %p388 = scmp.le.s32.totalorder 1, %s30
      %p389 = scmp.lt.s32.totalorder %s30, 3
      %p390 = pnand %p388, %p389
      %p391 = pneg %p390
      // Predicated region
      $region9: #{doctor_heads_forward.1} parent=5 // pred_check
        _
      $region10: #{doctor_heads_forward.1} parent=5 // pred_check_branch
        %393 = sbr.rel (%p390) target = $region12
      $region11: #{doctor_heads_forward.1} parent=5 // pred_region
        %s394 = ssub.s32 %s30, 1
        // Predicated region
        $region13: #{doctor_heads_forward.1} parent=11 // pred_check
          %p395 = pneg %p129
        $region14: #{doctor_heads_forward.1} parent=11 // pred_check_branch
          %397 = sbr.rel (%p395) target = $region16
        $region15: #{doctor_heads_forward.1} parent=11 // pred_region
          _
        $region16: #{doctor_heads_forward.1} parent=11 // pred_fallthru
          _
        // Predicated region
        $region17: #{doctor_heads_forward.1} parent=11 // pred_check
          %p398 = pneg %p150
        $region18: #{doctor_heads_forward.1} parent=11 // pred_check_branch
          %400 = sbr.rel (%p398) target = $region20
        $region19: #{doctor_heads_forward.1} parent=11 // pred_region
          _
        $region20: #{doctor_heads_forward.1} parent=11 // pred_fallthru
          _
        // Predicated region
        $region21: #{doctor_heads_forward.1} parent=11 // pred_check
          %p401 = pneg %p171
        $region22: #{doctor_heads_forward.1} parent=11 // pred_check_branch
          %403 = sbr.rel (%p401) target = $region24
        $region23: #{doctor_heads_forward.1} parent=11 // pred_region
          _
        $region24: #{doctor_heads_forward.1} parent=11 // pred_fallthru
          _
        // Predicated region
        $region25: #{doctor_heads_forward.1} parent=11 // pred_check
          %p404 = pneg %p192
        $region26: #{doctor_heads_forward.1} parent=11 // pred_check_branch
          %406 = sbr.rel (%p404) target = $region28
        $region27: #{doctor_heads_forward.1} parent=11 // pred_region
          _
        $region28: #{doctor_heads_forward.1} parent=11 // pred_fallthru
          _
        // Predicated region
        $region29: #{doctor_heads_forward.1} parent=11 // pred_check
          %p407 = pneg %p213
        $region30: #{doctor_heads_forward.1} parent=11 // pred_check_branch
          %409 = sbr.rel (%p407) target = $region32
        $region31: #{doctor_heads_forward.1} parent=11 // pred_region
          _
        $region32: #{doctor_heads_forward.1} parent=11 // pred_fallthru
          _
        // Predicated region
        $region33: #{doctor_heads_forward.1} parent=11 // pred_check
          %p410 = pneg %p234
        $region34: #{doctor_heads_forward.1} parent=11 // pred_check_branch
          %412 = sbr.rel (%p410) target = $region36
        $region35: #{doctor_heads_forward.1} parent=11 // pred_region
          _
        $region36: #{doctor_heads_forward.1} parent=11 // pred_fallthru
          _
        // Predicated region
        $region37: #{doctor_heads_forward.1} parent=11 // pred_check
          %p413 = pneg %p255
        $region38: #{doctor_heads_forward.1} parent=11 // pred_check_branch
          %415 = sbr.rel (%p413) target = $region40
        $region39: #{doctor_heads_forward.1} parent=11 // pred_region
          _
        $region40: #{doctor_heads_forward.1} parent=11 // pred_fallthru
          _
        // Predicated region
        $region41: #{doctor_heads_forward.1} parent=11 // pred_check
          %p416 = pneg %p276
        $region42: #{doctor_heads_forward.1} parent=11 // pred_check_branch
          %418 = sbr.rel (%p416) target = $region44
        $region43: #{doctor_heads_forward.1} parent=11 // pred_region
          _
        $region44: #{doctor_heads_forward.1} parent=11 // pred_fallthru
          _
      $region12: #{doctor_heads_forward.1} parent=5 // pred_fallthru
        _
      %p419 = scmp.lt.s32.totalorder %s30, 2
      // Predicated region
      $region45: #{doctor_heads_forward.1} parent=5 // pred_check
        %p420 = pneg %p419
      $region46: #{doctor_heads_forward.1} parent=5 // pred_check_branch
        %422 = sbr.rel (%p420) target = $region48
      $region47: #{doctor_heads_forward.1} parent=5 // pred_region
        // Predicated region
        $region49: #{doctor_heads_forward.1} parent=47 // pred_check
          %p423 = pneg %p50
        $region50: #{doctor_heads_forward.1} parent=47 // pred_check_branch
          %425 = sbr.rel (%p423) target = $region52
        $region51: #{doctor_heads_forward.1} parent=47 // pred_region
          %s426 = smul.u32 4, %s30
          %p427 = scmp.lt.s32.totalorder %s426, 7
          %s428 = scalar_select %p427, %s426, 7
          %s429 = smul.addr %s428, 8
          %s430 = scalar_lea.vmem %s0, %s429
          %s431 = smul.u32 4, %s30
        $region52: #{doctor_heads_forward.1} parent=47 // pred_fallthru
          _
        // Predicated region
        $region53: #{doctor_heads_forward.1} parent=47 // pred_check
          %p432 = pneg %p76
        $region54: #{doctor_heads_forward.1} parent=47 // pred_check_branch
          %434 = sbr.rel (%p432) target = $region56
        $region55: #{doctor_heads_forward.1} parent=47 // pred_region
          %s435 = smul.u32 4, %s30
          %p436 = scmp.lt.s32.totalorder %s435, 7
          %s437 = scalar_select %p436, %s435, 7
          %s438 = smul.addr %s437, 2
          %s439 = smul.addr %s438, 8
          %s440 = scalar_lea.vmem %s1, %s439
          %s441 = smul.u32 4, %s30
        $region56: #{doctor_heads_forward.1} parent=47 // pred_fallthru
          _
        // Predicated region
        $region57: #{doctor_heads_forward.1} parent=47 // pred_check
          %p442 = pneg %p102
        $region58: #{doctor_heads_forward.1} parent=47 // pred_check_branch
          %444 = sbr.rel (%p442) target = $region60
        $region59: #{doctor_heads_forward.1} parent=47 // pred_region
          %s445 = smul.u32 4, %s30
          %p446 = scmp.lt.s32.totalorder %s445, 7
          %s447 = scalar_select %p446, %s445, 7
          %s448 = smul.addr %s447, 8
          %s449 = scalar_lea.vmem %s2, %s448
          %s450 = smul.u32 4, %s30
        $region60: #{doctor_heads_forward.1} parent=47 // pred_fallthru
          _
      $region48: #{doctor_heads_forward.1} parent=5 // pred_fallthru
        _
      %p451 = scmp.le.s32.totalorder 1, %s30
      %p452 = scmp.lt.s32.totalorder %s30, 3
      %p453 = pnand %p451, %p452
      %p454 = pneg %p453
      // Predicated region
      $region61: #{doctor_heads_forward.1} parent=5 // pred_check
        _
      $region62: #{doctor_heads_forward.1} parent=5 // pred_check_branch
        %456 = sbr.rel (%p453) target = $region64
      $region63: #{doctor_heads_forward.1} parent=5 // pred_region
        %s457 = ssub.s32 %s30, 1
        %s458 = smul.u32 4, %s35
        %p459 = scmp.lt.s32.totalorder %s458, 7
        %s460 = scalar_select %p459, %s458, 7
        %s461 = smul.addr %s460, 8
        %s462 = scalar_lea.vmem %s0, %s461
        %p463 = pneg %p56
        %p464 = pneg %p53
        %s465 = smul.u32 4, %s35
        %p466 = scmp.lt.s32.totalorder %s465, 7
        %s467 = scalar_select %p466, %s465, 7
        %s468 = smul.addr %s467, 2
        %s469 = smul.addr %s468, 8
        %s470 = scalar_lea.vmem %s1, %s469
        %p471 = pneg %p82
        %p472 = pneg %p79
        %s473 = smul.u32 4, %s35
        %p474 = scmp.lt.s32.totalorder %s473, 7
        %s475 = scalar_select %p474, %s473, 7
        %s476 = smul.addr %s475, 8
        %s477 = scalar_lea.vmem %s2, %s476
        %p478 = pneg %p108
        %p479 = pneg %p105
        %p480 = pneg %p129
        %p481 = pneg %p126
        %p482 = pneg %p150
        %p483 = pneg %p147
        %p484 = pneg %p171
        %p485 = pneg %p168
        %p486 = pneg %p192
        %p487 = pneg %p189
        %p488 = pneg %p213
        %p489 = pneg %p210
        %p490 = pneg %p234
        %p491 = pneg %p231
        %p492 = pneg %p255
        %p493 = pneg %p252
        %p494 = pneg %p276
        %p495 = pneg %p273
        %p496 = pneg %p302
        %p497 = pneg %p299
        %s498 = sand.u32 %s289, 1
        %s499 = scalar_lea.sflag [#allocation3], %s498
        %s500 = sand.u32 %s289, 1
        %s501 = smul.addr %s500, 32
        %s502 = scalar_lea.vmem [#allocation2], %s501
        %p503 = pneg %p328
        %p504 = pneg %p325
        %s505 = sand.u32 %s35, 1
        %s506 = scalar_lea.sflag [#allocation5], %s505
        %s507 = sand.u32 %s315, 1
        %s508 = smul.addr %s507, 32
        %s509 = scalar_lea.vmem [#allocation4], %s508
        %p510 = pneg %p354
        %p511 = pneg %p351
        %s512 = sand.u32 %s35, 1
        %s513 = scalar_lea.sflag [#allocation5], %s512
        %s514 = sand.u32 %s341, 1
        %s515 = smul.addr %s514, 32
        %s516 = scalar_lea.vmem [#allocation6], %s515
        %p517 = pneg %p380
        %p518 = pneg %p377
        %s519 = sand.u32 %s367, 1
        %s520 = scalar_lea.sflag [#allocation8], %s519
        %s521 = sand.u32 %s367, 1
        %s522 = smul.addr %s521, 32
        %s523 = scalar_lea.vmem [#allocation7], %s522
        %s524 = smul.u32 4, %s35
        %p525 = scmp.lt.s32.totalorder %s524, 7
        %s526 = scalar_select %p525, %s524, 7
        %s527 = smul.addr %s526, 8
        %s528 = scalar_lea.vmem %s0, %s527
        %s529 = smul.u32 4, %s35
        %s530 = smul.u32 4, %s35
        %p531 = scmp.lt.s32.totalorder %s530, 7
        %s532 = scalar_select %p531, %s530, 7
        %s533 = smul.addr %s532, 2
        %s534 = smul.addr %s533, 8
        %s535 = scalar_lea.vmem %s1, %s534
        %s536 = smul.u32 4, %s35
        %s537 = smul.u32 4, %s35
        %p538 = scmp.lt.s32.totalorder %s537, 7
        %s539 = scalar_select %p538, %s537, 7
        %s540 = smul.addr %s539, 8
        %s541 = scalar_lea.vmem %s2, %s540
        %s542 = smul.u32 4, %s35
        %s543 = smul.u32 4, %s35
        %s544 = smul.u32 4, %s35
        %s545 = smul.u32 4, %s35
        %s546 = smul.u32 4, %s35
        %v547 = vld [vmem:[%s528] sm:$0xff]
        %v548 = vld [vmem:[%s528 + $0x8] sm:$0xff]
        %v549 = vld [vmem:[%s528 + $0x10] sm:$0xff]
        %v550 = vld [vmem:[%s528 + $0x18] sm:$0xff]
        %v551 = vld [vmem:[%s535] sm:$0xff]
        %v552 = vld [vmem:[%s535 + $0x8] sm:$0xff]
        %v553 = vld [vmem:[%s535 + $0x10] sm:$0xff]
        %v554 = vld [vmem:[%s535 + $0x18] sm:$0xff]
        %v555 = vld [vmem:[%s535 + $0x20] sm:$0xff]
        %v556 = vld [vmem:[%s535 + $0x28] sm:$0xff]
        %v557 = vld [vmem:[%s535 + $0x30] sm:$0xff]
        %v558 = vld [vmem:[%s535 + $0x38] sm:$0xff]
        %v559 = vld [vmem:[%s541] sm:$0xff]
        %v560 = vld [vmem:[%s541 + $0x8] sm:$0xff]
        %v561 = vld [vmem:[%s541 + $0x10] sm:$0xff]
        %v562 = vld [vmem:[%s541 + $0x18] sm:$0xff]
        %563 = vadd.xlane.f32.xlu0 %v559
        %v564 = vpop.xlane.xlu0 %563
        %565 = vadd.xlane.f32.xlu0 %v560
        %v566 = vpop.xlane.xlu0 %565
        %567 = vadd.xlane.f32.xlu0 %v561
        %v568 = vpop.xlane.xlu0 %567
        %569 = vadd.xlane.f32.xlu0 %v562
        %v570 = vpop.xlane.xlu0 %569
        %v571 = vrcp.pop 128.0
        %v572 = vmul.f32 %v564, %v571
        %v573 = vmul.f32 %v566, %v571
        %v574 = vmul.f32 %v568, %v571
        %v575 = vmul.f32 %v570, %v571
        %v576 = vsub.f32 %v559, %v572
        %v577 = vsub.f32 %v560, %v573
        %v578 = vsub.f32 %v561, %v574
        %v579 = vsub.f32 %v562, %v575
        %v580 = vmul.f32 %v576, %v576
        %v581 = vmul.f32 %v577, %v577
        %v582 = vmul.f32 %v578, %v578
        %v583 = vmul.f32 %v579, %v579
        %584 = vadd.xlane.f32.xlu0 %v580
        %v585 = vpop.xlane.xlu0 %584
        %586 = vadd.xlane.f32.xlu0 %v581
        %v587 = vpop.xlane.xlu0 %586
        %588 = vadd.xlane.f32.xlu0 %v582
        %v589 = vpop.xlane.xlu0 %588
        %590 = vadd.xlane.f32.xlu0 %v583
        %v591 = vpop.xlane.xlu0 %590
        %v592 = vmul.f32 %v585, %v571
        %v593 = vmul.f32 %v587, %v571
        %v594 = vmul.f32 %v589, %v571
        %v595 = vmul.f32 %v591, %v571
        %v596 = vadd.f32 %v592, 1e-12
        %v597 = vadd.f32 %v593, 1e-12
        %v598 = vadd.f32 %v594, 1e-12
        %v599 = vadd.f32 %v595, 1e-12
        %v600 = vrsqrt.pop %v596
        %v601 = vrsqrt.pop %v597
        %v602 = vrsqrt.pop %v598
        %v603 = vrsqrt.pop %v599
        %v604 = vmul.f32 %v576, %v600
        %v605 = vmul.f32 %v577, %v601
        %v606 = vmul.f32 %v578, %v602
        %v607 = vmul.f32 %v579, %v603
        %v608 = vld [vmem:[%s9] sm:$0x1]
        %v610 = vlaneseq
        %v611 = vshrl.u32 %v610, 7
        %v612 = vsub.s32 0, %v611
        %v613 = vrot.slane %v608, %v612
        %v615 = vmul.f32 %v604, %v613
        %v616 = vmul.f32 %v605, %v613
        %v617 = vmul.f32 %v606, %v613
        %v618 = vmul.f32 %v607, %v613
        %v619 = vld [vmem:[%s10] sm:$0x1]
        %v621 = vlaneseq
        %v622 = vshrl.u32 %v621, 7
        %v623 = vsub.s32 0, %v622
        %v624 = vrot.slane %v619, %v623
        %v626 = vadd.f32 %v615, %v624
        %v627 = vadd.f32 %v616, %v624
        %v628 = vadd.f32 %v617, %v624
        %v629 = vadd.f32 %v618, %v624
        %v630 = vld [vmem:[%s3] sm:$0xff]
        %v631 = vld [vmem:[%s3 + $0x8] sm:$0xff]
        %v632 = vld [vmem:[%s3 + $0x10] sm:$0xff]
        %v633 = vld [vmem:[%s3 + $0x18] sm:$0xff]
        %v634 = vld [vmem:[%s3 + $0x20] sm:$0xff]
        %v635 = vld [vmem:[%s3 + $0x28] sm:$0xff]
        %v636 = vld [vmem:[%s3 + $0x30] sm:$0xff]
        %v637 = vld [vmem:[%s3 + $0x38] sm:$0xff]
        %v638 = vld [vmem:[%s3 + $0x40] sm:$0xff]
        %v639 = vld [vmem:[%s3 + $0x48] sm:$0xff]
        %v640 = vld [vmem:[%s3 + $0x50] sm:$0xff]
        %v641 = vld [vmem:[%s3 + $0x58] sm:$0xff]
        %v642 = vld [vmem:[%s3 + $0x60] sm:$0xff]
        %v643 = vld [vmem:[%s3 + $0x68] sm:$0xff]
        %v644 = vld [vmem:[%s3 + $0x70] sm:$0xff]
        %v645 = vld [vmem:[%s3 + $0x78] sm:$0xff]
        %v646 = vld [vmem:[%s3 + $0x80] sm:$0xff]
        %v647 = vld [vmem:[%s3 + $0x88] sm:$0xff]
        %v648 = vld [vmem:[%s3 + $0x90] sm:$0xff]
        %v649 = vld [vmem:[%s3 + $0x98] sm:$0xff]
        %v650 = vld [vmem:[%s3 + $0xa0] sm:$0xff]
        %v651 = vld [vmem:[%s3 + $0xa8] sm:$0xff]
        %v652 = vld [vmem:[%s3 + $0xb0] sm:$0xff]
        %v653 = vld [vmem:[%s3 + $0xb8] sm:$0xff]
        %v654 = vld [vmem:[%s3 + $0xc0] sm:$0xff]
        %v655 = vld [vmem:[%s3 + $0xc8] sm:$0xff]
        %v656 = vld [vmem:[%s3 + $0xd0] sm:$0xff]
        %v657 = vld [vmem:[%s3 + $0xd8] sm:$0xff]
        %v658 = vld [vmem:[%s3 + $0xe0] sm:$0xff]
        %v659 = vld [vmem:[%s3 + $0xe8] sm:$0xff]
        %v660 = vld [vmem:[%s3 + $0xf0] sm:$0xff]
        %v661 = vld [vmem:[%s3 + $0xf8] sm:$0xff]
        %v662 = vld [vmem:[%s3 + $0x100] sm:$0xff]
        %v663 = vld [vmem:[%s3 + $0x108] sm:$0xff]
        %v664 = vld [vmem:[%s3 + $0x110] sm:$0xff]
        %v665 = vld [vmem:[%s3 + $0x118] sm:$0xff]
        %v666 = vld [vmem:[%s3 + $0x120] sm:$0xff]
        %v667 = vld [vmem:[%s3 + $0x128] sm:$0xff]
        %v668 = vld [vmem:[%s3 + $0x130] sm:$0xff]
        %v669 = vld [vmem:[%s3 + $0x138] sm:$0xff]
        %v670 = vld [vmem:[%s3 + $0x140] sm:$0xff]
        %v671 = vld [vmem:[%s3 + $0x148] sm:$0xff]
        %v672 = vld [vmem:[%s3 + $0x150] sm:$0xff]
        %v673 = vld [vmem:[%s3 + $0x158] sm:$0xff]
        %v674 = vld [vmem:[%s3 + $0x160] sm:$0xff]
        %v675 = vld [vmem:[%s3 + $0x168] sm:$0xff]
        %v676 = vld [vmem:[%s3 + $0x170] sm:$0xff]
        %v677 = vld [vmem:[%s3 + $0x178] sm:$0xff]
        %v678 = vld [vmem:[%s3 + $0x180] sm:$0xff]
        %v679 = vld [vmem:[%s3 + $0x188] sm:$0xff]
        %v680 = vld [vmem:[%s3 + $0x190] sm:$0xff]
        %v681 = vld [vmem:[%s3 + $0x198] sm:$0xff]
        %v682 = vld [vmem:[%s3 + $0x1a0] sm:$0xff]
        %v683 = vld [vmem:[%s3 + $0x1a8] sm:$0xff]
        %v684 = vld [vmem:[%s3 + $0x1b0] sm:$0xff]
        %v685 = vld [vmem:[%s3 + $0x1b8] sm:$0xff]
        %v686 = vld [vmem:[%s3 + $0x1c0] sm:$0xff]
        %v687 = vld [vmem:[%s3 + $0x1c8] sm:$0xff]
        %v688 = vld [vmem:[%s3 + $0x1d0] sm:$0xff]
        %v689 = vld [vmem:[%s3 + $0x1d8] sm:$0xff]
        %v690 = vld [vmem:[%s3 + $0x1e0] sm:$0xff]
        %v691 = vld [vmem:[%s3 + $0x1e8] sm:$0xff]
        %v692 = vld [vmem:[%s3 + $0x1f0] sm:$0xff]
        %v693 = vld [vmem:[%s3 + $0x1f8] sm:$0xff]
        %v694 = vld [vmem:[%s4] sm:$0xf]
        %v696 = vlaneseq
        %v697 = vshrl.u32 %v696, 7
        %v698 = vsub.s32 0, %v697
        %v699 = vrot.slane %v694, %v698
        %v700 = vlaneseq
        %v701 = vshrl.u32 %v700, 7
        %v702 = vsub.s32 1, %v701
        %v703 = vrot.slane %v694, %v702
        %v704 = vlaneseq
        %v705 = vshrl.u32 %v704, 7
        %v706 = vsub.s32 2, %v705
        %v707 = vrot.slane %v694, %v706
        %v708 = vlaneseq
        %v709 = vshrl.u32 %v708, 7
        %v710 = vsub.s32 3, %v709
        %v711 = vrot.slane %v694, %v710
        %716 = vmatprep.subr.mxu0 %v631
        %717 = vmatpush1.msra.mxu0 %v630
        %718 = vmatprep.subr.mxu0 %v635
        %719 = vmatpush1.msra.mxu0 %v634
        %720 = vmatprep.subr.mxu0 %v639
        %721 = vmatpush1.msra.mxu0 %v638
        %722 = vmatprep.subr.mxu0 %v643
        %723 = vmatpush1.msra.mxu0 %v642
        %724 = vmatprep.subr.mxu0 %v647
        %725 = vmatpush1.msra.mxu0 %v646
        %726 = vmatprep.subr.mxu0 %v651
        %727 = vmatpush1.msra.mxu0 %v650
        %728 = vmatprep.subr.mxu0 %v655
        %729 = vmatpush1.msra.mxu0 %v654
        %730 = vmatprep.subr.mxu0 %v659
        %731 = vmatpush1.msra.mxu0 %v658
        %732 = vmatprep.subr.mxu0 %v663
        %733 = vmatpush1.msra.mxu0 %v662
        %734 = vmatprep.subr.mxu0 %v667
        %735 = vmatpush1.msra.mxu0 %v666
        %736 = vmatprep.subr.mxu0 %v671
        %737 = vmatpush1.msra.mxu0 %v670
        %738 = vmatprep.subr.mxu0 %v675
        %739 = vmatpush1.msra.mxu0 %v674
        %740 = vmatprep.subr.mxu0 %v679
        %741 = vmatpush1.msra.mxu0 %v678
        %742 = vmatprep.subr.mxu0 %v683
        %743 = vmatpush1.msra.mxu0 %v682
        %744 = vmatprep.subr.mxu0 %v687
        %745 = vmatpush1.msra.mxu0 %v686
        %746 = vmatprep.subr.mxu0 %v691
        %747 = vmatpush1.msra.mxu0 %v690
        %748 = vmatprep.subr.mxu0 0.0
        %749 = vmatpush1.msra.mxu0 0.0
        %750 = vmatprep.subr.mxu0 0.0
        %751 = vmatpush1.msra.mxu0 0.0
        %752 = vmatprep.subr.mxu0 0.0
        %753 = vmatpush1.msra.mxu0 0.0
        %754 = vmatprep.subr.mxu0 0.0
        %755 = vmatpush1.msra.mxu0 0.0
        %756 = vmatprep.subr.mxu0 0.0
        %757 = vmatpush1.msra.mxu0 0.0
        %758 = vmatprep.subr.mxu0 0.0
        %759 = vmatpush1.msra.mxu0 0.0
        %760 = vmatprep.subr.mxu0 0.0
        %761 = vmatpush1.msra.mxu0 0.0
        %762 = vmatprep.subr.mxu0 0.0
        %763 = vmatpush1.msra.mxu0 0.0
        %764 = vmatprep.subr.mxu0 0.0
        %765 = vmatpush1.msra.mxu0 0.0
        %766 = vmatprep.subr.mxu0 0.0
        %767 = vmatpush1.msra.mxu0 0.0
        %768 = vmatprep.subr.mxu0 0.0
        %769 = vmatpush1.msra.mxu0 0.0
        %770 = vmatprep.subr.mxu0 0.0
        %771 = vmatpush1.msra.mxu0 0.0
        %772 = vmatprep.subr.mxu0 0.0
        %773 = vmatpush1.msra.mxu0 0.0
        %774 = vmatprep.subr.mxu0 0.0
        %775 = vmatpush1.msra.mxu0 0.0
        %776 = vmatprep.subr.mxu0 0.0
        %777 = vmatpush1.msra.mxu0 0.0
        %778 = vmatprep.subr.mxu0 0.0
        %779 = vmatpush1.msra.mxu0 0.0
        %780 = vmatprep.mubr.f32.mxu0 0.0
        %781 = vmatmul.mubr.f32.gmra.mrb[0].mxu0 %v547
        %v782 = vpop.f32.mrb[0].mxu0
        %v783 = vadd.f32 %v699, %v782
        %v784 = vpop.f32.mrb[0].mxu0
        %v785 = vadd.f32 %v703, %v784
        %786 = vmatprep.mubr.f32.mxu0 0.0
        %787 = vmatmul.mubr.f32.gmra.mrb[0].mxu0 %v548
        %v788 = vpop.f32.mrb[0].mxu0
        %v789 = vadd.f32 %v699, %v788
        %v790 = vpop.f32.mrb[0].mxu0
        %v791 = vadd.f32 %v703, %v790
        %792 = vmatprep.mubr.f32.mxu0 0.0
        %793 = vmatmul.mubr.f32.gmra.mrb[0].mxu0 %v549
        %v794 = vpop.f32.mrb[0].mxu0
        %v795 = vadd.f32 %v699, %v794
        %v796 = vpop.f32.mrb[0].mxu0
        %v797 = vadd.f32 %v703, %v796
        %798 = vmatprep.mubr.f32.mxu0 0.0
        %799 = vmatmul.mubr.f32.gmra.mrb[0].mxu0 %v550
        %v800 = vpop.f32.mrb[0].mxu0
        %v801 = vadd.f32 %v699, %v800
        %v802 = vpop.f32.mrb[0].mxu0
        %v803 = vadd.f32 %v703, %v802
        %804 = vdwg.mxu0
        %805 = vmatprep.subr.mxu0 %v633
        %806 = vmatpush1.msra.mxu0 %v632
        %807 = vmatprep.subr.mxu0 %v637
        %808 = vmatpush1.msra.mxu0 %v636
        %809 = vmatprep.subr.mxu0 %v641
        %810 = vmatpush1.msra.mxu0 %v640
        %811 = vmatprep.subr.mxu0 %v645
        %812 = vmatpush1.msra.mxu0 %v644
        %813 = vmatprep.subr.mxu0 %v649
        %814 = vmatpush1.msra.mxu0 %v648
        %815 = vmatprep.subr.mxu0 %v653
        %816 = vmatpush1.msra.mxu0 %v652
        %817 = vmatprep.subr.mxu0 %v657
        %818 = vmatpush1.msra.mxu0 %v656
        %819 = vmatprep.subr.mxu0 %v661
        %820 = vmatpush1.msra.mxu0 %v660
        %821 = vmatprep.subr.mxu0 %v665
        %822 = vmatpush1.msra.mxu0 %v664
        %823 = vmatprep.subr.mxu0 %v669
        %824 = vmatpush1.msra.mxu0 %v668
        %825 = vmatprep.subr.mxu0 %v673
        %826 = vmatpush1.msra.mxu0 %v672
        %827 = vmatprep.subr.mxu0 %v677
        %828 = vmatpush1.msra.mxu0 %v676
        %829 = vmatprep.subr.mxu0 %v681
        %830 = vmatpush1.msra.mxu0 %v680
        %831 = vmatprep.subr.mxu0 %v685
        %832 = vmatpush1.msra.mxu0 %v684
        %833 = vmatprep.subr.mxu0 %v689
        %834 = vmatpush1.msra.mxu0 %v688
        %835 = vmatprep.subr.mxu0 %v693
        %836 = vmatpush1.msra.mxu0 %v692
        %837 = vmatprep.subr.mxu0 0.0
        %838 = vmatpush1.msra.mxu0 0.0
        %839 = vmatprep.subr.mxu0 0.0
        %840 = vmatpush1.msra.mxu0 0.0
        %841 = vmatprep.subr.mxu0 0.0
        %842 = vmatpush1.msra.mxu0 0.0
        %843 = vmatprep.subr.mxu0 0.0
        %844 = vmatpush1.msra.mxu0 0.0
        %845 = vmatprep.subr.mxu0 0.0
        %846 = vmatpush1.msra.mxu0 0.0
        %847 = vmatprep.subr.mxu0 0.0
        %848 = vmatpush1.msra.mxu0 0.0
        %849 = vmatprep.subr.mxu0 0.0
        %850 = vmatpush1.msra.mxu0 0.0
        %851 = vmatprep.subr.mxu0 0.0
        %852 = vmatpush1.msra.mxu0 0.0
        %853 = vmatprep.subr.mxu0 0.0
        %854 = vmatpush1.msra.mxu0 0.0
        %855 = vmatprep.subr.mxu0 0.0
        %856 = vmatpush1.msra.mxu0 0.0
        %857 = vmatprep.subr.mxu0 0.0
        %858 = vmatpush1.msra.mxu0 0.0
        %859 = vmatprep.subr.mxu0 0.0
        %860 = vmatpush1.msra.mxu0 0.0
        %861 = vmatprep.subr.mxu0 0.0
        %862 = vmatpush1.msra.mxu0 0.0
        %863 = vmatprep.subr.mxu0 0.0
        %864 = vmatpush1.msra.mxu0 0.0
        %865 = vmatprep.subr.mxu0 0.0
        %866 = vmatpush1.msra.mxu0 0.0
        %867 = vmatprep.subr.mxu0 0.0
        %868 = vmatpush1.msra.mxu0 0.0
        %869 = vmatprep.mubr.f32.mxu0 0.0
        %870 = vmatmul.mubr.f32.gmra.mrb[0].mxu0 %v547
        %v871 = vpop.f32.mrb[0].mxu0
        %v872 = vadd.f32 %v707, %v871
        %v873 = vpop.f32.mrb[0].mxu0
        %v874 = vadd.f32 %v711, %v873
        %875 = vmatprep.mubr.f32.mxu0 0.0
        %876 = vmatmul.mubr.f32.gmra.mrb[0].mxu0 %v548
        %v877 = vpop.f32.mrb[0].mxu0
        %v878 = vadd.f32 %v707, %v877
        %v879 = vpop.f32.mrb[0].mxu0
        %v880 = vadd.f32 %v711, %v879
        %881 = vmatprep.mubr.f32.mxu0 0.0
        %882 = vmatmul.mubr.f32.gmra.mrb[0].mxu0 %v549
        %v883 = vpop.f32.mrb[0].mxu0
        %v884 = vadd.f32 %v707, %v883
        %v885 = vpop.f32.mrb[0].mxu0
        %v886 = vadd.f32 %v711, %v885
        %887 = vmatprep.mubr.f32.mxu0 0.0
        %888 = vmatmul.mubr.f32.gmra.mrb[0].mxu0 %v550
        %v889 = vpop.f32.mrb[0].mxu0
        %v890 = vadd.f32 %v707, %v889
        %v891 = vpop.f32.mrb[0].mxu0
        %v892 = vadd.f32 %v711, %v891
        %893 = vdwg.mxu0
        %v894 = vld [vmem:[%s5] sm:$0xff]
        %v895 = vld [vmem:[%s5 + $0x8] sm:$0xff]
        %v896 = vld [vmem:[%s5 + $0x10] sm:$0xff]
        %v897 = vld [vmem:[%s5 + $0x18] sm:$0xff]
        %v898 = vld [vmem:[%s5 + $0x20] sm:$0xff]
        %v899 = vld [vmem:[%s5 + $0x28] sm:$0xff]
        %v900 = vld [vmem:[%s5 + $0x30] sm:$0xff]
        %v901 = vld [vmem:[%s5 + $0x38] sm:$0xff]
        %v902 = vld [vmem:[%s5 + $0x40] sm:$0xff]
        %v903 = vld [vmem:[%s5 + $0x48] sm:$0xff]
        %v904 = vld [vmem:[%s5 + $0x50] sm:$0xff]
        %v905 = vld [vmem:[%s5 + $0x58] sm:$0xff]
        %v906 = vld [vmem:[%s5 + $0x60] sm:$0xff]
        %v907 = vld [vmem:[%s5 + $0x68] sm:$0xff]
        %v908 = vld [vmem:[%s5 + $0x70] sm:$0xff]
        %v909 = vld [vmem:[%s5 + $0x78] sm:$0xff]
        %v910 = vld [vmem:[%s5 + $0x80] sm:$0xff]
        %v911 = vld [vmem:[%s5 + $0x88] sm:$0xff]
        %v912 = vld [vmem:[%s5 + $0x90] sm:$0xff]
        %v913 = vld [vmem:[%s5 + $0x98] sm:$0xff]
        %v914 = vld [vmem:[%s5 + $0xa0] sm:$0xff]
        %v915 = vld [vmem:[%s5 + $0xa8] sm:$0xff]
        %v916 = vld [vmem:[%s5 + $0xb0] sm:$0xff]
        %v917 = vld [vmem:[%s5 + $0xb8] sm:$0xff]
        %v918 = vld [vmem:[%s5 + $0xc0] sm:$0xff]
        %v919 = vld [vmem:[%s5 + $0xc8] sm:$0xff]
        %v920 = vld [vmem:[%s5 + $0xd0] sm:$0xff]
        %v921 = vld [vmem:[%s5 + $0xd8] sm:$0xff]
        %v922 = vld [vmem:[%s5 + $0xe0] sm:$0xff]
        %v923 = vld [vmem:[%s5 + $0xe8] sm:$0xff]
        %v924 = vld [vmem:[%s5 + $0xf0] sm:$0xff]
        %v925 = vld [vmem:[%s5 + $0xf8] sm:$0xff]
        %v926 = vld [vmem:[%s6] sm:$0x3]
        %v928 = vlaneseq
        %v929 = vshrl.u32 %v928, 7
        %v930 = vsub.s32 0, %v929
        %v931 = vrot.slane %v926, %v930
        %v932 = vlaneseq
        %v933 = vshrl.u32 %v932, 7
        %v934 = vsub.s32 1, %v933
        %v935 = vrot.slane %v926, %v934
        %938 = vmatprep.subr.mxu0 %v895
        %939 = vmatpush1.msra.mxu0 %v894
        %940 = vmatprep.subr.mxu0 %v897
        %941 = vmatpush1.msra.mxu0 %v896
        %942 = vmatprep.subr.mxu0 %v899
        %943 = vmatpush1.msra.mxu0 %v898
        %944 = vmatprep.subr.mxu0 %v901
        %945 = vmatpush1.msra.mxu0 %v900
        %946 = vmatprep.subr.mxu0 %v903
        %947 = vmatpush1.msra.mxu0 %v902
        %948 = vmatprep.subr.mxu0 %v905
        %949 = vmatpush1.msra.mxu0 %v904
        %950 = vmatprep.subr.mxu0 %v907
        %951 = vmatpush1.msra.mxu0 %v906
        %952 = vmatprep.subr.mxu0 %v909
        %953 = vmatpush1.msra.mxu0 %v908
        %954 = vmatprep.subr.mxu0 %v911
        %955 = vmatpush1.msra.mxu0 %v910
        %956 = vmatprep.subr.mxu0 %v913
        %957 = vmatpush1.msra.mxu0 %v912
        %958 = vmatprep.subr.mxu0 %v915
        %959 = vmatpush1.msra.mxu0 %v914
        %960 = vmatprep.subr.mxu0 %v917
        %961 = vmatpush1.msra.mxu0 %v916
        %962 = vmatprep.subr.mxu0 %v919
        %963 = vmatpush1.msra.mxu0 %v918
        %964 = vmatprep.subr.mxu0 %v921
        %965 = vmatpush1.msra.mxu0 %v920
        %966 = vmatprep.subr.mxu0 %v923
        %967 = vmatpush1.msra.mxu0 %v922
        %968 = vmatprep.subr.mxu0 %v925
        %969 = vmatpush1.msra.mxu0 %v924
        %970 = vmatprep.subr.mxu0 0.0
        %971 = vmatpush1.msra.mxu0 0.0
        %972 = vmatprep.subr.mxu0 0.0
        %973 = vmatpush1.msra.mxu0 0.0
        %974 = vmatprep.subr.mxu0 0.0
        %975 = vmatpush1.msra.mxu0 0.0
        %976 = vmatprep.subr.mxu0 0.0
        %977 = vmatpush1.msra.mxu0 0.0
        %978 = vmatprep.subr.mxu0 0.0
        %979 = vmatpush1.msra.mxu0 0.0
        %980 = vmatprep.subr.mxu0 0.0
        %981 = vmatpush1.msra.mxu0 0.0
        %982 = vmatprep.subr.mxu0 0.0
        %983 = vmatpush1.msra.mxu0 0.0
        %984 = vmatprep.subr.mxu0 0.0
        %985 = vmatpush1.msra.mxu0 0.0
        %986 = vmatprep.subr.mxu0 0.0
        %987 = vmatpush1.msra.mxu0 0.0
        %988 = vmatprep.subr.mxu0 0.0
        %989 = vmatpush1.msra.mxu0 0.0
        %990 = vmatprep.subr.mxu0 0.0
        %991 = vmatpush1.msra.mxu0 0.0
        %992 = vmatprep.subr.mxu0 0.0
        %993 = vmatpush1.msra.mxu0 0.0
        %994 = vmatprep.subr.mxu0 0.0
        %995 = vmatpush1.msra.mxu0 0.0
        %996 = vmatprep.subr.mxu0 0.0
        %997 = vmatpush1.msra.mxu0 0.0
        %998 = vmatprep.subr.mxu0 0.0
        %999 = vmatpush1.msra.mxu0 0.0
        %1000 = vmatprep.subr.mxu0 0.0
        %1001 = vmatpush1.msra.mxu0 0.0
        %1002 = vmatprep.mubr.f32.mxu0 0.0
        %1003 = vmatmul.mubr.f32.gmra.mrb[0].mxu0 %v626
        %v1004 = vpop.f32.mrb[0].mxu0
        %v1005 = vadd.f32 %v931, %v1004
        %v1006 = vpop.f32.mrb[0].mxu0
        %v1007 = vadd.f32 %v935, %v1006
        %1008 = vmatprep.mubr.f32.mxu0 0.0
        %1009 = vmatmul.mubr.f32.gmra.mrb[0].mxu0 %v627
        %v1010 = vpop.f32.mrb[0].mxu0
        %v1011 = vadd.f32 %v931, %v1010
        %v1012 = vpop.f32.mrb[0].mxu0
        %v1013 = vadd.f32 %v935, %v1012
        %1014 = vmatprep.mubr.f32.mxu0 0.0
        %1015 = vmatmul.mubr.f32.gmra.mrb[0].mxu0 %v628
        %v1016 = vpop.f32.mrb[0].mxu0
        %v1017 = vadd.f32 %v931, %v1016
        %v1018 = vpop.f32.mrb[0].mxu0
        %v1019 = vadd.f32 %v935, %v1018
        %1020 = vmatprep.mubr.f32.mxu0 0.0
        %1021 = vmatmul.mubr.f32.gmra.mrb[0].mxu0 %v629
        %v1022 = vpop.f32.mrb[0].mxu0
        %v1023 = vadd.f32 %v931, %v1022
        %v1024 = vpop.f32.mrb[0].mxu0
        %v1025 = vadd.f32 %v935, %v1024
        %1026 = vdwg.mxu0
        %v1027 = vld [vmem:[%s7] sm:$0xff]
        %v1028 = vld [vmem:[%s7 + $0x8] sm:$0xff]
        %v1029 = vld [vmem:[%s7 + $0x10] sm:$0xff]
        %v1030 = vld [vmem:[%s7 + $0x18] sm:$0xff]
        %v1031 = vld [vmem:[%s7 + $0x20] sm:$0xff]
        %v1032 = vld [vmem:[%s7 + $0x28] sm:$0xff]
        %v1033 = vld [vmem:[%s7 + $0x30] sm:$0xff]
        %v1034 = vld [vmem:[%s7 + $0x38] sm:$0xff]
        %v1035 = vld [vmem:[%s7 + $0x40] sm:$0xff]
        %v1036 = vld [vmem:[%s7 + $0x48] sm:$0xff]
        %v1037 = vld [vmem:[%s7 + $0x50] sm:$0xff]
        %v1038 = vld [vmem:[%s7 + $0x58] sm:$0xff]
        %v1039 = vld [vmem:[%s7 + $0x60] sm:$0xff]
        %v1040 = vld [vmem:[%s7 + $0x68] sm:$0xff]
        %v1041 = vld [vmem:[%s7 + $0x70] sm:$0xff]
        %v1042 = vld [vmem:[%s7 + $0x78] sm:$0xff]
        %v1043 = vld [vmem:[%s8] sm:$0x1]
        %v1045 = vlaneseq
        %v1046 = vshrl.u32 %v1045, 7
        %v1047 = vsub.s32 0, %v1046
        %v1048 = vrot.slane %v1043, %v1047
        %1050 = vmatprep.subr.mxu0 0.0
        %1051 = vmatpush1.msra.mxu0 %v1027
        %1052 = vmatprep.subr.mxu0 0.0
        %1053 = vmatpush1.msra.mxu0 %v1028
        %1054 = vmatprep.subr.mxu0 0.0
        %1055 = vmatpush1.msra.mxu0 %v1029
        %1056 = vmatprep.subr.mxu0 0.0
        %1057 = vmatpush1.msra.mxu0 %v1030
        %1058 = vmatprep.subr.mxu0 0.0
        %1059 = vmatpush1.msra.mxu0 %v1031
        %1060 = vmatprep.subr.mxu0 0.0
        %1061 = vmatpush1.msra.mxu0 %v1032
        %1062 = vmatprep.subr.mxu0 0.0
        %1063 = vmatpush1.msra.mxu0 %v1033
        %1064 = vmatprep.subr.mxu0 0.0
        %1065 = vmatpush1.msra.mxu0 %v1034
        %1066 = vmatprep.subr.mxu0 0.0
        %1067 = vmatpush1.msra.mxu0 %v1035
        %1068 = vmatprep.subr.mxu0 0.0
        %1069 = vmatpush1.msra.mxu0 %v1036
        %1070 = vmatprep.subr.mxu0 0.0
        %1071 = vmatpush1.msra.mxu0 %v1037
        %1072 = vmatprep.subr.mxu0 0.0
        %1073 = vmatpush1.msra.mxu0 %v1038
        %1074 = vmatprep.subr.mxu0 0.0
        %1075 = vmatpush1.msra.mxu0 %v1039
        %1076 = vmatprep.subr.mxu0 0.0
        %1077 = vmatpush1.msra.mxu0 %v1040
        %1078 = vmatprep.subr.mxu0 0.0
        %1079 = vmatpush1.msra.mxu0 %v1041
        %1080 = vmatprep.subr.mxu0 0.0
        %1081 = vmatpush1.msra.mxu0 %v1042
        %1082 = vmatprep.subr.mxu0 0.0
        %1083 = vmatpush1.msra.mxu0 0.0
        %1084 = vmatprep.subr.mxu0 0.0
        %1085 = vmatpush1.msra.mxu0 0.0
        %1086 = vmatprep.subr.mxu0 0.0
        %1087 = vmatpush1.msra.mxu0 0.0
        %1088 = vmatprep.subr.mxu0 0.0
        %1089 = vmatpush1.msra.mxu0 0.0
        %1090 = vmatprep.subr.mxu0 0.0
        %1091 = vmatpush1.msra.mxu0 0.0
        %1092 = vmatprep.subr.mxu0 0.0
        %1093 = vmatpush1.msra.mxu0 0.0
        %1094 = vmatprep.subr.mxu0 0.0
        %1095 = vmatpush1.msra.mxu0 0.0
        %1096 = vmatprep.subr.mxu0 0.0
        %1097 = vmatpush1.msra.mxu0 0.0
        %1098 = vmatprep.subr.mxu0 0.0
        %1099 = vmatpush1.msra.mxu0 0.0
        %1100 = vmatprep.subr.mxu0 0.0
        %1101 = vmatpush1.msra.mxu0 0.0
        %1102 = vmatprep.subr.mxu0 0.0
        %1103 = vmatpush1.msra.mxu0 0.0
        %1104 = vmatprep.subr.mxu0 0.0
        %1105 = vmatpush1.msra.mxu0 0.0
        %1106 = vmatprep.subr.mxu0 0.0
        %1107 = vmatpush1.msra.mxu0 0.0
        %1108 = vmatprep.subr.mxu0 0.0
        %1109 = vmatpush1.msra.mxu0 0.0
        %1110 = vmatprep.subr.mxu0 0.0
        %1111 = vmatpush1.msra.mxu0 0.0
        %1112 = vmatprep.subr.mxu0 0.0
        %1113 = vmatpush1.msra.mxu0 0.0
        %1114 = vmatprep.mubr.f32.mxu0 0.0
        %1115 = vmatmul.mubr.f32.gmra.mrb[0].mxu0 %v551
        %v1116 = vpop.f32.mrb[0].mxu0
        %v1117 = vadd.f32 %v1048, %v1116
        %v1118 = vpop.f32.mrb[0].mxu0
        %1119 = vmatprep.mubr.f32.mxu0 0.0
        %1120 = vmatmul.mubr.f32.gmra.mrb[0].mxu0 %v552
        %v1121 = vpop.f32.mrb[0].mxu0
        %v1122 = vadd.f32 %v1048, %v1121
        %v1123 = vpop.f32.mrb[0].mxu0
        %1124 = vmatprep.mubr.f32.mxu0 0.0
        %1125 = vmatmul.mubr.f32.gmra.mrb[0].mxu0 %v553
        %v1126 = vpop.f32.mrb[0].mxu0
        %v1127 = vadd.f32 %v1048, %v1126
        %v1128 = vpop.f32.mrb[0].mxu0
        %1129 = vmatprep.mubr.f32.mxu0 0.0
        %1130 = vmatmul.mubr.f32.gmra.mrb[0].mxu0 %v554
        %v1131 = vpop.f32.mrb[0].mxu0
        %v1132 = vadd.f32 %v1048, %v1131
        %v1133 = vpop.f32.mrb[0].mxu0
        %1134 = vmatprep.mubr.f32.mxu0 0.0
        %1135 = vmatmul.mubr.f32.gmra.mrb[0].mxu0 %v555
        %v1136 = vpop.f32.mrb[0].mxu0
        %v1137 = vadd.f32 %v1048, %v1136
        %v1138 = vpop.f32.mrb[0].mxu0
        %1139 = vmatprep.mubr.f32.mxu0 0.0
        %1140 = vmatmul.mubr.f32.gmra.mrb[0].mxu0 %v556
        %v1141 = vpop.f32.mrb[0].mxu0
        %v1142 = vadd.f32 %v1048, %v1141
        %v1143 = vpop.f32.mrb[0].mxu0
        %1144 = vmatprep.mubr.f32.mxu0 0.0
        %1145 = vmatmul.mubr.f32.gmra.mrb[0].mxu0 %v557
        %v1146 = vpop.f32.mrb[0].mxu0
        %v1147 = vadd.f32 %v1048, %v1146
        %v1148 = vpop.f32.mrb[0].mxu0
        %1149 = vmatprep.mubr.f32.mxu0 0.0
        %1150 = vmatmul.mubr.f32.gmra.mrb[0].mxu0 %v558
        %v1151 = vpop.f32.mrb[0].mxu0
        %v1152 = vadd.f32 %v1048, %v1151
        %v1153 = vpop.f32.mrb[0].mxu0
        %1154 = vdwg.mxu0
        %vm1155 = vcmask 130048
        %1156 = vst.msk [vmem:[%s502] sm:$0xff] %vm1155, %v874
        %1157 = vst.msk [vmem:[%s502 + $0x8] sm:$0xff] %vm1155, %v880
        %1158 = vst.msk [vmem:[%s502 + $0x10] sm:$0xff] %vm1155, %v886
        %1159 = vst.msk [vmem:[%s502 + $0x18] sm:$0xff] %vm1155, %v892
        %1160 = vmatprep.subr.mxu0 0.0
        %1161 = vmatpush1.xpose.msra.mxu0 %v1005
        %1162 = vmatprep.subr.mxu0 0.0
        %1163 = vmatpush1.xpose.msra.mxu0 0.0
        %1164 = vmatprep.subr.mxu0 0.0
        %1165 = vmatpush1.xpose.msra.mxu0 0.0
        %1166 = vmatprep.subr.mxu0 0.0
        %1167 = vmatpush1.xpose.msra.mxu0 0.0
        %1168 = vmatprep.subr.mxu0 0.0
        %1169 = vmatpush1.xpose.msra.mxu0 0.0
        %1170 = vmatprep.subr.mxu0 0.0
        %1171 = vmatpush1.xpose.msra.mxu0 0.0
        %1172 = vmatprep.subr.mxu0 0.0
        %1173 = vmatpush1.xpose.msra.mxu0 0.0
        %1174 = vmatprep.subr.mxu0 0.0
        %1175 = vmatpush1.xpose.msra.mxu0 0.0
        %1176 = vmatprep.subr.mxu0 0.0
        %1177 = vmatpush1.xpose.msra.mxu0 0.0
        %1178 = vmatprep.subr.mxu0 0.0
        %1179 = vmatpush1.xpose.msra.mxu0 0.0
        %1180 = vmatprep.subr.mxu0 0.0
        %1181 = vmatpush1.xpose.msra.mxu0 0.0
        %1182 = vmatprep.subr.mxu0 0.0
        %1183 = vmatpush1.xpose.msra.mxu0 0.0
        %1184 = vmatprep.subr.mxu0 0.0
        %1185 = vmatpush1.xpose.msra.mxu0 0.0
        %1186 = vmatprep.subr.mxu0 0.0
        %1187 = vmatpush1.xpose.msra.mxu0 0.0
        %1188 = vmatprep.subr.mxu0 0.0
        %1189 = vmatpush1.xpose.msra.mxu0 0.0
        %1190 = vmatprep.subr.mxu0 0.0
        %1191 = vmatpush1.xpose.msra.mxu0 0.0
        %1192 = vmatprep.subr.mxu0 0.0
        %1193 = vmatpush1.xpose.msra.mxu0 0.0
        %1194 = vmatprep.subr.mxu0 0.0
        %1195 = vmatpush1.xpose.msra.mxu0 0.0
        %1196 = vmatprep.subr.mxu0 0.0
        %1197 = vmatpush1.xpose.msra.mxu0 0.0
        %1198 = vmatprep.subr.mxu0 0.0
        %1199 = vmatpush1.xpose.msra.mxu0 0.0
        %1200 = vmatprep.subr.mxu0 0.0
        %1201 = vmatpush1.xpose.msra.mxu0 0.0
        %1202 = vmatprep.subr.mxu0 0.0
        %1203 = vmatpush1.xpose.msra.mxu0 0.0
        %1204 = vmatprep.subr.mxu0 0.0
        %1205 = vmatpush1.xpose.msra.mxu0 0.0
        %1206 = vmatprep.subr.mxu0 0.0
        %1207 = vmatpush1.xpose.msra.mxu0 0.0
        %1208 = vmatprep.subr.mxu0 0.0
        %1209 = vmatpush1.xpose.msra.mxu0 0.0
        %1210 = vmatprep.subr.mxu0 0.0
        %1211 = vmatpush1.xpose.msra.mxu0 0.0
        %1212 = vmatprep.subr.mxu0 0.0
        %1213 = vmatpush1.xpose.msra.mxu0 0.0
        %1214 = vmatprep.subr.mxu0 0.0
        %1215 = vmatpush1.xpose.msra.mxu0 0.0
        %1216 = vmatprep.subr.mxu0 0.0
        %1217 = vmatpush1.xpose.msra.mxu0 0.0
        %1218 = vmatprep.subr.mxu0 0.0
        %1219 = vmatpush1.xpose.msra.mxu0 0.0
        %1220 = vmatprep.subr.mxu0 0.0
        %1221 = vmatpush1.xpose.msra.mxu0 0.0
        %1222 = vmatprep.subr.mxu0 0.0
        %1223 = vmatpush1.xpose.msra.mxu0 0.0
        %1224 = vmatprep.mubr.f32.mxu0 0.0
        %1225 = vmatmul.mubr.f32.gmra.mrb[0].mxu0 %v783
        %v1226 = vpop.f32.mrb[0].mxu0
        %v1227 = vadd.f32 0.0, %v1226
        %v1228 = vpop.f32.mrb[0].mxu0
        %1229 = vdwg.mxu0
        %1230 = vmatprep.subr.mxu0 0.0
        %1231 = vmatpush1.xpose.msra.mxu0 %v1011
        %1232 = vmatprep.subr.mxu0 0.0
        %1233 = vmatpush1.xpose.msra.mxu0 0.0
        %1234 = vmatprep.subr.mxu0 0.0
        %1235 = vmatpush1.xpose.msra.mxu0 0.0
        %1236 = vmatprep.subr.mxu0 0.0
        %1237 = vmatpush1.xpose.msra.mxu0 0.0
        %1238 = vmatprep.subr.mxu0 0.0
        %1239 = vmatpush1.xpose.msra.mxu0 0.0
        %1240 = vmatprep.subr.mxu0 0.0
        %1241 = vmatpush1.xpose.msra.mxu0 0.0
        %1242 = vmatprep.subr.mxu0 0.0
        %1243 = vmatpush1.xpose.msra.mxu0 0.0
        %1244 = vmatprep.subr.mxu0 0.0
        %1245 = vmatpush1.xpose.msra.mxu0 0.0
        %1246 = vmatprep.subr.mxu0 0.0
        %1247 = vmatpush1.xpose.msra.mxu0 0.0
        %1248 = vmatprep.subr.mxu0 0.0
        %1249 = vmatpush1.xpose.msra.mxu0 0.0
        %1250 = vmatprep.subr.mxu0 0.0
        %1251 = vmatpush1.xpose.msra.mxu0 0.0
        %1252 = vmatprep.subr.mxu0 0.0
        %1253 = vmatpush1.xpose.msra.mxu0 0.0
        %1254 = vmatprep.subr.mxu0 0.0
        %1255 = vmatpush1.xpose.msra.mxu0 0.0
        %1256 = vmatprep.subr.mxu0 0.0
        %1257 = vmatpush1.xpose.msra.mxu0 0.0
        %1258 = vmatprep.subr.mxu0 0.0
        %1259 = vmatpush1.xpose.msra.mxu0 0.0
        %1260 = vmatprep.subr.mxu0 0.0
        %1261 = vmatpush1.xpose.msra.mxu0 0.0
        %1262 = vmatprep.subr.mxu0 0.0
        %1263 = vmatpush1.xpose.msra.mxu0 0.0
        %1264 = vmatprep.subr.mxu0 0.0
        %1265 = vmatpush1.xpose.msra.mxu0 0.0
        %1266 = vmatprep.subr.mxu0 0.0
        %1267 = vmatpush1.xpose.msra.mxu0 0.0
        %1268 = vmatprep.subr.mxu0 0.0
        %1269 = vmatpush1.xpose.msra.mxu0 0.0
        %1270 = vmatprep.subr.mxu0 0.0
        %1271 = vmatpush1.xpose.msra.mxu0 0.0
        %1272 = vmatprep.subr.mxu0 0.0
        %1273 = vmatpush1.xpose.msra.mxu0 0.0
        %1274 = vmatprep.subr.mxu0 0.0
        %1275 = vmatpush1.xpose.msra.mxu0 0.0
        %1276 = vmatprep.subr.mxu0 0.0
        %1277 = vmatpush1.xpose.msra.mxu0 0.0
        %1278 = vmatprep.subr.mxu0 0.0
        %1279 = vmatpush1.xpose.msra.mxu0 0.0
        %1280 = vmatprep.subr.mxu0 0.0
        %1281 = vmatpush1.xpose.msra.mxu0 0.0
        %1282 = vmatprep.subr.mxu0 0.0
        %1283 = vmatpush1.xpose.msra.mxu0 0.0
        %1284 = vmatprep.subr.mxu0 0.0
        %1285 = vmatpush1.xpose.msra.mxu0 0.0
        %1286 = vmatprep.subr.mxu0 0.0
        %1287 = vmatpush1.xpose.msra.mxu0 0.0
        %1288 = vmatprep.subr.mxu0 0.0
        %1289 = vmatpush1.xpose.msra.mxu0 0.0
        %1290 = vmatprep.subr.mxu0 0.0
        %1291 = vmatpush1.xpose.msra.mxu0 0.0
        %1292 = vmatprep.subr.mxu0 0.0
        %1293 = vmatpush1.xpose.msra.mxu0 0.0
        %1294 = vmatprep.mubr.f32.mxu0 0.0
        %1295 = vmatmul.mubr.f32.gmra.mrb[0].mxu0 %v789
        %v1296 = vpop.f32.mrb[0].mxu0
        %v1297 = vadd.f32 0.0, %v1296
        %v1298 = vpop.f32.mrb[0].mxu0
        %1299 = vdwg.mxu0
        %1300 = vmatprep.subr.mxu0 0.0
        %1301 = vmatpush1.xpose.msra.mxu0 %v1017
        %1302 = vmatprep.subr.mxu0 0.0
        %1303 = vmatpush1.xpose.msra.mxu0 0.0
        %1304 = vmatprep.subr.mxu0 0.0
        %1305 = vmatpush1.xpose.msra.mxu0 0.0
        %1306 = vmatprep.subr.mxu0 0.0
        %1307 = vmatpush1.xpose.msra.mxu0 0.0
        %1308 = vmatprep.subr.mxu0 0.0
        %1309 = vmatpush1.xpose.msra.mxu0 0.0
        %1310 = vmatprep.subr.mxu0 0.0
        %1311 = vmatpush1.xpose.msra.mxu0 0.0
        %1312 = vmatprep.subr.mxu0 0.0
        %1313 = vmatpush1.xpose.msra.mxu0 0.0
        %1314 = vmatprep.subr.mxu0 0.0
        %1315 = vmatpush1.xpose.msra.mxu0 0.0
        %1316 = vmatprep.subr.mxu0 0.0
        %1317 = vmatpush1.xpose.msra.mxu0 0.0
        %1318 = vmatprep.subr.mxu0 0.0
        %1319 = vmatpush1.xpose.msra.mxu0 0.0
        %1320 = vmatprep.subr.mxu0 0.0
        %1321 = vmatpush1.xpose.msra.mxu0 0.0
        %1322 = vmatprep.subr.mxu0 0.0
        %1323 = vmatpush1.xpose.msra.mxu0 0.0
        %1324 = vmatprep.subr.mxu0 0.0
        %1325 = vmatpush1.xpose.msra.mxu0 0.0
        %1326 = vmatprep.subr.mxu0 0.0
        %1327 = vmatpush1.xpose.msra.mxu0 0.0
        %1328 = vmatprep.subr.mxu0 0.0
        %1329 = vmatpush1.xpose.msra.mxu0 0.0
        %1330 = vmatprep.subr.mxu0 0.0
        %1331 = vmatpush1.xpose.msra.mxu0 0.0
        %1332 = vmatprep.subr.mxu0 0.0
        %1333 = vmatpush1.xpose.msra.mxu0 0.0
        %1334 = vmatprep.subr.mxu0 0.0
        %1335 = vmatpush1.xpose.msra.mxu0 0.0
        %1336 = vmatprep.subr.mxu0 0.0
        %1337 = vmatpush1.xpose.msra.mxu0 0.0
        %1338 = vmatprep.subr.mxu0 0.0
        %1339 = vmatpush1.xpose.msra.mxu0 0.0
        %1340 = vmatprep.subr.mxu0 0.0
        %1341 = vmatpush1.xpose.msra.mxu0 0.0
        %1342 = vmatprep.subr.mxu0 0.0
        %1343 = vmatpush1.xpose.msra.mxu0 0.0
        %1344 = vmatprep.subr.mxu0 0.0
        %1345 = vmatpush1.xpose.msra.mxu0 0.0
        %1346 = vmatprep.subr.mxu0 0.0
        %1347 = vmatpush1.xpose.msra.mxu0 0.0
        %1348 = vmatprep.subr.mxu0 0.0
        %1349 = vmatpush1.xpose.msra.mxu0 0.0
        %1350 = vmatprep.subr.mxu0 0.0
        %1351 = vmatpush1.xpose.msra.mxu0 0.0
        %1352 = vmatprep.subr.mxu0 0.0
        %1353 = vmatpush1.xpose.msra.mxu0 0.0
        %1354 = vmatprep.subr.mxu0 0.0
        %1355 = vmatpush1.xpose.msra.mxu0 0.0
        %1356 = vmatprep.subr.mxu0 0.0
        %1357 = vmatpush1.xpose.msra.mxu0 0.0
        %1358 = vmatprep.subr.mxu0 0.0
        %1359 = vmatpush1.xpose.msra.mxu0 0.0
        %1360 = vmatprep.subr.mxu0 0.0
        %1361 = vmatpush1.xpose.msra.mxu0 0.0
        %1362 = vmatprep.subr.mxu0 0.0
        %1363 = vmatpush1.xpose.msra.mxu0 0.0
        %1364 = vmatprep.mubr.f32.mxu0 0.0
        %1365 = vmatmul.mubr.f32.gmra.mrb[0].mxu0 %v795
        %v1366 = vpop.f32.mrb[0].mxu0
        %v1367 = vadd.f32 0.0, %v1366
        %v1368 = vpop.f32.mrb[0].mxu0
        %1369 = vdwg.mxu0
        %1370 = vmatprep.subr.mxu0 0.0
        %1371 = vmatpush1.xpose.msra.mxu0 %v1023
        %1372 = vmatprep.subr.mxu0 0.0
        %1373 = vmatpush1.xpose.msra.mxu0 0.0
        %1374 = vmatprep.subr.mxu0 0.0
        %1375 = vmatpush1.xpose.msra.mxu0 0.0
        %1376 = vmatprep.subr.mxu0 0.0
        %1377 = vmatpush1.xpose.msra.mxu0 0.0
        %1378 = vmatprep.subr.mxu0 0.0
        %1379 = vmatpush1.xpose.msra.mxu0 0.0
        %1380 = vmatprep.subr.mxu0 0.0
        %1381 = vmatpush1.xpose.msra.mxu0 0.0
        %1382 = vmatprep.subr.mxu0 0.0
        %1383 = vmatpush1.xpose.msra.mxu0 0.0
        %1384 = vmatprep.subr.mxu0 0.0
        %1385 = vmatpush1.xpose.msra.mxu0 0.0
        %1386 = vmatprep.subr.mxu0 0.0
        %1387 = vmatpush1.xpose.msra.mxu0 0.0
        %1388 = vmatprep.subr.mxu0 0.0
        %1389 = vmatpush1.xpose.msra.mxu0 0.0
        %1390 = vmatprep.subr.mxu0 0.0
        %1391 = vmatpush1.xpose.msra.mxu0 0.0
        %1392 = vmatprep.subr.mxu0 0.0
        %1393 = vmatpush1.xpose.msra.mxu0 0.0
        %1394 = vmatprep.subr.mxu0 0.0
        %1395 = vmatpush1.xpose.msra.mxu0 0.0
        %1396 = vmatprep.subr.mxu0 0.0
        %1397 = vmatpush1.xpose.msra.mxu0 0.0
        %1398 = vmatprep.subr.mxu0 0.0
        %1399 = vmatpush1.xpose.msra.mxu0 0.0
        %1400 = vmatprep.subr.mxu0 0.0
        %1401 = vmatpush1.xpose.msra.mxu0 0.0
        %1402 = vmatprep.subr.mxu0 0.0
        %1403 = vmatpush1.xpose.msra.mxu0 0.0
        %1404 = vmatprep.subr.mxu0 0.0
        %1405 = vmatpush1.xpose.msra.mxu0 0.0
        %1406 = vmatprep.subr.mxu0 0.0
        %1407 = vmatpush1.xpose.msra.mxu0 0.0
        %1408 = vmatprep.subr.mxu0 0.0
        %1409 = vmatpush1.xpose.msra.mxu0 0.0
        %1410 = vmatprep.subr.mxu0 0.0
        %1411 = vmatpush1.xpose.msra.mxu0 0.0
        %1412 = vmatprep.subr.mxu0 0.0
        %1413 = vmatpush1.xpose.msra.mxu0 0.0
        %1414 = vmatprep.subr.mxu0 0.0
        %1415 = vmatpush1.xpose.msra.mxu0 0.0
        %1416 = vmatprep.subr.mxu0 0.0
        %1417 = vmatpush1.xpose.msra.mxu0 0.0
        %1418 = vmatprep.subr.mxu0 0.0
        %1419 = vmatpush1.xpose.msra.mxu0 0.0
        %1420 = vmatprep.subr.mxu0 0.0
        %1421 = vmatpush1.xpose.msra.mxu0 0.0
        %1422 = vmatprep.subr.mxu0 0.0
        %1423 = vmatpush1.xpose.msra.mxu0 0.0
        %1424 = vmatprep.subr.mxu0 0.0
        %1425 = vmatpush1.xpose.msra.mxu0 0.0
        %1426 = vmatprep.subr.mxu0 0.0
        %1427 = vmatpush1.xpose.msra.mxu0 0.0
        %1428 = vmatprep.subr.mxu0 0.0
        %1429 = vmatpush1.xpose.msra.mxu0 0.0
        %1430 = vmatprep.subr.mxu0 0.0
        %1431 = vmatpush1.xpose.msra.mxu0 0.0
        %1432 = vmatprep.subr.mxu0 0.0
        %1433 = vmatpush1.xpose.msra.mxu0 0.0
        %1434 = vmatprep.mubr.f32.mxu0 0.0
        %1435 = vmatmul.mubr.f32.gmra.mrb[0].mxu0 %v801
        %v1436 = vpop.f32.mrb[0].mxu0
        %v1437 = vadd.f32 0.0, %v1436
        %v1438 = vpop.f32.mrb[0].mxu0
        %1439 = vdwg.mxu0
        %vm1440 = vcmask 64512
        %1441 = vst.msk [vmem:[%s509] sm:$0xff] %vm1440, %v1227
        %1442 = vst.msk [vmem:[%s509 + $0x8] sm:$0xff] %vm1440, %v1297
        %1443 = vst.msk [vmem:[%s509 + $0x10] sm:$0xff] %vm1440, %v1367
        %1444 = vst.msk [vmem:[%s509 + $0x18] sm:$0xff] %vm1440, %v1437
        %1445 = vmatprep.subr.mxu0 0.0
        %1446 = vmatpush1.xpose.msra.mxu0 %v1007
        %1447 = vmatprep.subr.mxu0 0.0
        %1448 = vmatpush1.xpose.msra.mxu0 0.0
        %1449 = vmatprep.subr.mxu0 0.0
        %1450 = vmatpush1.xpose.msra.mxu0 0.0
        %1451 = vmatprep.subr.mxu0 0.0
        %1452 = vmatpush1.xpose.msra.mxu0 0.0
        %1453 = vmatprep.subr.mxu0 0.0
        %1454 = vmatpush1.xpose.msra.mxu0 0.0
        %1455 = vmatprep.subr.mxu0 0.0
        %1456 = vmatpush1.xpose.msra.mxu0 0.0
        %1457 = vmatprep.subr.mxu0 0.0
        %1458 = vmatpush1.xpose.msra.mxu0 0.0
        %1459 = vmatprep.subr.mxu0 0.0
        %1460 = vmatpush1.xpose.msra.mxu0 0.0
        %1461 = vmatprep.subr.mxu0 0.0
        %1462 = vmatpush1.xpose.msra.mxu0 0.0
        %1463 = vmatprep.subr.mxu0 0.0
        %1464 = vmatpush1.xpose.msra.mxu0 0.0
        %1465 = vmatprep.subr.mxu0 0.0
        %1466 = vmatpush1.xpose.msra.mxu0 0.0
        %1467 = vmatprep.subr.mxu0 0.0
        %1468 = vmatpush1.xpose.msra.mxu0 0.0
        %1469 = vmatprep.subr.mxu0 0.0
        %1470 = vmatpush1.xpose.msra.mxu0 0.0
        %1471 = vmatprep.subr.mxu0 0.0
        %1472 = vmatpush1.xpose.msra.mxu0 0.0
        %1473 = vmatprep.subr.mxu0 0.0
        %1474 = vmatpush1.xpose.msra.mxu0 0.0
        %1475 = vmatprep.subr.mxu0 0.0
        %1476 = vmatpush1.xpose.msra.mxu0 0.0
        %1477 = vmatprep.subr.mxu0 0.0
        %1478 = vmatpush1.xpose.msra.mxu0 0.0
        %1479 = vmatprep.subr.mxu0 0.0
        %1480 = vmatpush1.xpose.msra.mxu0 0.0
        %1481 = vmatprep.subr.mxu0 0.0
        %1482 = vmatpush1.xpose.msra.mxu0 0.0
        %1483 = vmatprep.subr.mxu0 0.0
        %1484 = vmatpush1.xpose.msra.mxu0 0.0
        %1485 = vmatprep.subr.mxu0 0.0
        %1486 = vmatpush1.xpose.msra.mxu0 0.0
        %1487 = vmatprep.subr.mxu0 0.0
        %1488 = vmatpush1.xpose.msra.mxu0 0.0
        %1489 = vmatprep.subr.mxu0 0.0
        %1490 = vmatpush1.xpose.msra.mxu0 0.0
        %1491 = vmatprep.subr.mxu0 0.0
        %1492 = vmatpush1.xpose.msra.mxu0 0.0
        %1493 = vmatprep.subr.mxu0 0.0
        %1494 = vmatpush1.xpose.msra.mxu0 0.0
        %1495 = vmatprep.subr.mxu0 0.0
        %1496 = vmatpush1.xpose.msra.mxu0 0.0
        %1497 = vmatprep.subr.mxu0 0.0
        %1498 = vmatpush1.xpose.msra.mxu0 0.0
        %1499 = vmatprep.subr.mxu0 0.0
        %1500 = vmatpush1.xpose.msra.mxu0 0.0
        %1501 = vmatprep.subr.mxu0 0.0
        %1502 = vmatpush1.xpose.msra.mxu0 0.0
        %1503 = vmatprep.subr.mxu0 0.0
        %1504 = vmatpush1.xpose.msra.mxu0 0.0
        %1505 = vmatprep.subr.mxu0 0.0
        %1506 = vmatpush1.xpose.msra.mxu0 0.0
        %1507 = vmatprep.subr.mxu0 0.0
        %1508 = vmatpush1.xpose.msra.mxu0 0.0
        %1509 = vmatprep.mubr.f32.mxu0 0.0
        %1510 = vmatmul.mubr.f32.gmra.mrb[0].mxu0 %v785
        %v1511 = vpop.f32.mrb[0].mxu0
        %v1512 = vadd.f32 0.0, %v1511
        %v1513 = vpop.f32.mrb[0].mxu0
        %1514 = vdwg.mxu0
        %1515 = vmatprep.subr.mxu0 0.0
        %1516 = vmatpush1.xpose.msra.mxu0 %v1013
        %1517 = vmatprep.subr.mxu0 0.0
        %1518 = vmatpush1.xpose.msra.mxu0 0.0
        %1519 = vmatprep.subr.mxu0 0.0
        %1520 = vmatpush1.xpose.msra.mxu0 0.0
        %1521 = vmatprep.subr.mxu0 0.0
        %1522 = vmatpush1.xpose.msra.mxu0 0.0
        %1523 = vmatprep.subr.mxu0 0.0
        %1524 = vmatpush1.xpose.msra.mxu0 0.0
        %1525 = vmatprep.subr.mxu0 0.0
        %1526 = vmatpush1.xpose.msra.mxu0 0.0
        %1527 = vmatprep.subr.mxu0 0.0
        %1528 = vmatpush1.xpose.msra.mxu0 0.0
        %1529 = vmatprep.subr.mxu0 0.0
        %1530 = vmatpush1.xpose.msra.mxu0 0.0
        %1531 = vmatprep.subr.mxu0 0.0
        %1532 = vmatpush1.xpose.msra.mxu0 0.0
        %1533 = vmatprep.subr.mxu0 0.0
        %1534 = vmatpush1.xpose.msra.mxu0 0.0
        %1535 = vmatprep.subr.mxu0 0.0
        %1536 = vmatpush1.xpose.msra.mxu0 0.0
        %1537 = vmatprep.subr.mxu0 0.0
        %1538 = vmatpush1.xpose.msra.mxu0 0.0
        %1539 = vmatprep.subr.mxu0 0.0
        %1540 = vmatpush1.xpose.msra.mxu0 0.0
        %1541 = vmatprep.subr.mxu0 0.0
        %1542 = vmatpush1.xpose.msra.mxu0 0.0
        %1543 = vmatprep.subr.mxu0 0.0
        %1544 = vmatpush1.xpose.msra.mxu0 0.0
        %1545 = vmatprep.subr.mxu0 0.0
        %1546 = vmatpush1.xpose.msra.mxu0 0.0
        %1547 = vmatprep.subr.mxu0 0.0
        %1548 = vmatpush1.xpose.msra.mxu0 0.0
        %1549 = vmatprep.subr.mxu0 0.0
        %1550 = vmatpush1.xpose.msra.mxu0 0.0
        %1551 = vmatprep.subr.mxu0 0.0
        %1552 = vmatpush1.xpose.msra.mxu0 0.0
        %1553 = vmatprep.subr.mxu0 0.0
        %1554 = vmatpush1.xpose.msra.mxu0 0.0
        %1555 = vmatprep.subr.mxu0 0.0
        %1556 = vmatpush1.xpose.msra.mxu0 0.0
        %1557 = vmatprep.subr.mxu0 0.0
        %1558 = vmatpush1.xpose.msra.mxu0 0.0
        %1559 = vmatprep.subr.mxu0 0.0
        %1560 = vmatpush1.xpose.msra.mxu0 0.0
        %1561 = vmatprep.subr.mxu0 0.0
        %1562 = vmatpush1.xpose.msra.mxu0 0.0
        %1563 = vmatprep.subr.mxu0 0.0
        %1564 = vmatpush1.xpose.msra.mxu0 0.0
        %1565 = vmatprep.subr.mxu0 0.0
        %1566 = vmatpush1.xpose.msra.mxu0 0.0
        %1567 = vmatprep.subr.mxu0 0.0
        %1568 = vmatpush1.xpose.msra.mxu0 0.0
        %1569 = vmatprep.subr.mxu0 0.0
        %1570 = vmatpush1.xpose.msra.mxu0 0.0
        %1571 = vmatprep.subr.mxu0 0.0
        %1572 = vmatpush1.xpose.msra.mxu0 0.0
        %1573 = vmatprep.subr.mxu0 0.0
        %1574 = vmatpush1.xpose.msra.mxu0 0.0
        %1575 = vmatprep.subr.mxu0 0.0
        %1576 = vmatpush1.xpose.msra.mxu0 0.0
        %1577 = vmatprep.subr.mxu0 0.0
        %1578 = vmatpush1.xpose.msra.mxu0 0.0
        %1579 = vmatprep.mubr.f32.mxu0 0.0
        %1580 = vmatmul.mubr.f32.gmra.mrb[0].mxu0 %v791
        %v1581 = vpop.f32.mrb[0].mxu0
        %v1582 = vadd.f32 0.0, %v1581
        %v1583 = vpop.f32.mrb[0].mxu0
        %1584 = vdwg.mxu0
        %1585 = vmatprep.subr.mxu0 0.0
        %1586 = vmatpush1.xpose.msra.mxu0 %v1019
        %1587 = vmatprep.subr.mxu0 0.0
        %1588 = vmatpush1.xpose.msra.mxu0 0.0
        %1589 = vmatprep.subr.mxu0 0.0
        %1590 = vmatpush1.xpose.msra.mxu0 0.0
        %1591 = vmatprep.subr.mxu0 0.0
        %1592 = vmatpush1.xpose.msra.mxu0 0.0
        %1593 = vmatprep.subr.mxu0 0.0
        %1594 = vmatpush1.xpose.msra.mxu0 0.0
        %1595 = vmatprep.subr.mxu0 0.0
        %1596 = vmatpush1.xpose.msra.mxu0 0.0
        %1597 = vmatprep.subr.mxu0 0.0
        %1598 = vmatpush1.xpose.msra.mxu0 0.0
        %1599 = vmatprep.subr.mxu0 0.0
        %1600 = vmatpush1.xpose.msra.mxu0 0.0
        %1601 = vmatprep.subr.mxu0 0.0
        %1602 = vmatpush1.xpose.msra.mxu0 0.0
        %1603 = vmatprep.subr.mxu0 0.0
        %1604 = vmatpush1.xpose.msra.mxu0 0.0
        %1605 = vmatprep.subr.mxu0 0.0
        %1606 = vmatpush1.xpose.msra.mxu0 0.0
        %1607 = vmatprep.subr.mxu0 0.0
        %1608 = vmatpush1.xpose.msra.mxu0 0.0
        %1609 = vmatprep.subr.mxu0 0.0
        %1610 = vmatpush1.xpose.msra.mxu0 0.0
        %1611 = vmatprep.subr.mxu0 0.0
        %1612 = vmatpush1.xpose.msra.mxu0 0.0
        %1613 = vmatprep.subr.mxu0 0.0
        %1614 = vmatpush1.xpose.msra.mxu0 0.0
        %1615 = vmatprep.subr.mxu0 0.0
        %1616 = vmatpush1.xpose.msra.mxu0 0.0
        %1617 = vmatprep.subr.mxu0 0.0
        %1618 = vmatpush1.xpose.msra.mxu0 0.0
        %1619 = vmatprep.subr.mxu0 0.0
        %1620 = vmatpush1.xpose.msra.mxu0 0.0
        %1621 = vmatprep.subr.mxu0 0.0
        %1622 = vmatpush1.xpose.msra.mxu0 0.0
        %1623 = vmatprep.subr.mxu0 0.0
        %1624 = vmatpush1.xpose.msra.mxu0 0.0
        %1625 = vmatprep.subr.mxu0 0.0
        %1626 = vmatpush1.xpose.msra.mxu0 0.0
        %1627 = vmatprep.subr.mxu0 0.0
        %1628 = vmatpush1.xpose.msra.mxu0 0.0
        %1629 = vmatprep.subr.mxu0 0.0
        %1630 = vmatpush1.xpose.msra.mxu0 0.0
        %1631 = vmatprep.subr.mxu0 0.0
        %1632 = vmatpush1.xpose.msra.mxu0 0.0
        %1633 = vmatprep.subr.mxu0 0.0
        %1634 = vmatpush1.xpose.msra.mxu0 0.0
        %1635 = vmatprep.subr.mxu0 0.0
        %1636 = vmatpush1.xpose.msra.mxu0 0.0
        %1637 = vmatprep.subr.mxu0 0.0
        %1638 = vmatpush1.xpose.msra.mxu0 0.0
        %1639 = vmatprep.subr.mxu0 0.0
        %1640 = vmatpush1.xpose.msra.mxu0 0.0
        %1641 = vmatprep.subr.mxu0 0.0
        %1642 = vmatpush1.xpose.msra.mxu0 0.0
        %1643 = vmatprep.subr.mxu0 0.0
        %1644 = vmatpush1.xpose.msra.mxu0 0.0
        %1645 = vmatprep.subr.mxu0 0.0
        %1646 = vmatpush1.xpose.msra.mxu0 0.0
        %1647 = vmatprep.subr.mxu0 0.0
        %1648 = vmatpush1.xpose.msra.mxu0 0.0
        %1649 = vmatprep.mubr.f32.mxu0 0.0
        %1650 = vmatmul.mubr.f32.gmra.mrb[0].mxu0 %v797
        %v1651 = vpop.f32.mrb[0].mxu0
        %v1652 = vadd.f32 0.0, %v1651
        %v1653 = vpop.f32.mrb[0].mxu0
        %1654 = vdwg.mxu0
        %1655 = vmatprep.subr.mxu0 0.0
        %1656 = vmatpush1.xpose.msra.mxu0 %v1025
        %1657 = vmatprep.subr.mxu0 0.0
        %1658 = vmatpush1.xpose.msra.mxu0 0.0
        %1659 = vmatprep.subr.mxu0 0.0
        %1660 = vmatpush1.xpose.msra.mxu0 0.0
        %1661 = vmatprep.subr.mxu0 0.0
        %1662 = vmatpush1.xpose.msra.mxu0 0.0
        %1663 = vmatprep.subr.mxu0 0.0
        %1664 = vmatpush1.xpose.msra.mxu0 0.0
        %1665 = vmatprep.subr.mxu0 0.0
        %1666 = vmatpush1.xpose.msra.mxu0 0.0
        %1667 = vmatprep.subr.mxu0 0.0
        %1668 = vmatpush1.xpose.msra.mxu0 0.0
        %1669 = vmatprep.subr.mxu0 0.0
        %1670 = vmatpush1.xpose.msra.mxu0 0.0
        %1671 = vmatprep.subr.mxu0 0.0
        %1672 = vmatpush1.xpose.msra.mxu0 0.0
        %1673 = vmatprep.subr.mxu0 0.0
        %1674 = vmatpush1.xpose.msra.mxu0 0.0
        %1675 = vmatprep.subr.mxu0 0.0
        %1676 = vmatpush1.xpose.msra.mxu0 0.0
        %1677 = vmatprep.subr.mxu0 0.0
        %1678 = vmatpush1.xpose.msra.mxu0 0.0
        %1679 = vmatprep.subr.mxu0 0.0
        %1680 = vmatpush1.xpose.msra.mxu0 0.0
        %1681 = vmatprep.subr.mxu0 0.0
        %1682 = vmatpush1.xpose.msra.mxu0 0.0
        %1683 = vmatprep.subr.mxu0 0.0
        %1684 = vmatpush1.xpose.msra.mxu0 0.0
        %1685 = vmatprep.subr.mxu0 0.0
        %1686 = vmatpush1.xpose.msra.mxu0 0.0
        %1687 = vmatprep.subr.mxu0 0.0
        %1688 = vmatpush1.xpose.msra.mxu0 0.0
        %1689 = vmatprep.subr.mxu0 0.0
        %1690 = vmatpush1.xpose.msra.mxu0 0.0
        %1691 = vmatprep.subr.mxu0 0.0
        %1692 = vmatpush1.xpose.msra.mxu0 0.0
        %1693 = vmatprep.subr.mxu0 0.0
        %1694 = vmatpush1.xpose.msra.mxu0 0.0
        %1695 = vmatprep.subr.mxu0 0.0
        %1696 = vmatpush1.xpose.msra.mxu0 0.0
        %1697 = vmatprep.subr.mxu0 0.0
        %1698 = vmatpush1.xpose.msra.mxu0 0.0
        %1699 = vmatprep.subr.mxu0 0.0
        %1700 = vmatpush1.xpose.msra.mxu0 0.0
        %1701 = vmatprep.subr.mxu0 0.0
        %1702 = vmatpush1.xpose.msra.mxu0 0.0
        %1703 = vmatprep.subr.mxu0 0.0
        %1704 = vmatpush1.xpose.msra.mxu0 0.0
        %1705 = vmatprep.subr.mxu0 0.0
        %1706 = vmatpush1.xpose.msra.mxu0 0.0
        %1707 = vmatprep.subr.mxu0 0.0
        %1708 = vmatpush1.xpose.msra.mxu0 0.0
        %1709 = vmatprep.subr.mxu0 0.0
        %1710 = vmatpush1.xpose.msra.mxu0 0.0
        %1711 = vmatprep.subr.mxu0 0.0
        %1712 = vmatpush1.xpose.msra.mxu0 0.0
        %1713 = vmatprep.subr.mxu0 0.0
        %1714 = vmatpush1.xpose.msra.mxu0 0.0
        %1715 = vmatprep.subr.mxu0 0.0
        %1716 = vmatpush1.xpose.msra.mxu0 0.0
        %1717 = vmatprep.subr.mxu0 0.0
        %1718 = vmatpush1.xpose.msra.mxu0 0.0
        %1719 = vmatprep.mubr.f32.mxu0 0.0
        %1720 = vmatmul.mubr.f32.gmra.mrb[0].mxu0 %v803
        %v1721 = vpop.f32.mrb[0].mxu0
        %v1722 = vadd.f32 0.0, %v1721
        %v1723 = vpop.f32.mrb[0].mxu0
        %1724 = vdwg.mxu0
        %1725 = vst.msk [vmem:[%s516] sm:$0xff] %vm1440, %v1512
        %1726 = vst.msk [vmem:[%s516 + $0x8] sm:$0xff] %vm1440, %v1582
        %1727 = vst.msk [vmem:[%s516 + $0x10] sm:$0xff] %vm1440, %v1652
        %1728 = vst.msk [vmem:[%s516 + $0x18] sm:$0xff] %vm1440, %v1722
        %1729 = vmatprep.subr.mxu0 0.0
        %1730 = vmatpush1.xpose.msra.mxu0 %v1117
        %1731 = vmatprep.subr.mxu0 0.0
        %1732 = vmatpush1.xpose.msra.mxu0 %v1122
        %1733 = vmatprep.subr.mxu0 0.0
        %1734 = vmatpush1.xpose.msra.mxu0 0.0
        %1735 = vmatprep.subr.mxu0 0.0
        %1736 = vmatpush1.xpose.msra.mxu0 0.0
        %1737 = vmatprep.subr.mxu0 0.0
        %1738 = vmatpush1.xpose.msra.mxu0 0.0
        %1739 = vmatprep.subr.mxu0 0.0
        %1740 = vmatpush1.xpose.msra.mxu0 0.0
        %1741 = vmatprep.subr.mxu0 0.0
        %1742 = vmatpush1.xpose.msra.mxu0 0.0
        %1743 = vmatprep.subr.mxu0 0.0
        %1744 = vmatpush1.xpose.msra.mxu0 0.0
        %1745 = vmatprep.subr.mxu0 0.0
        %1746 = vmatpush1.xpose.msra.mxu0 0.0
        %1747 = vmatprep.subr.mxu0 0.0
        %1748 = vmatpush1.xpose.msra.mxu0 0.0
        %1749 = vmatprep.subr.mxu0 0.0
        %1750 = vmatpush1.xpose.msra.mxu0 0.0
        %1751 = vmatprep.subr.mxu0 0.0
        %1752 = vmatpush1.xpose.msra.mxu0 0.0
        %1753 = vmatprep.subr.mxu0 0.0
        %1754 = vmatpush1.xpose.msra.mxu0 0.0
        %1755 = vmatprep.subr.mxu0 0.0
        %1756 = vmatpush1.xpose.msra.mxu0 0.0
        %1757 = vmatprep.subr.mxu0 0.0
        %1758 = vmatpush1.xpose.msra.mxu0 0.0
        %1759 = vmatprep.subr.mxu0 0.0
        %1760 = vmatpush1.xpose.msra.mxu0 0.0
        %1761 = vmatprep.subr.mxu0 0.0
        %1762 = vmatpush1.xpose.msra.mxu0 0.0
        %1763 = vmatprep.subr.mxu0 0.0
        %1764 = vmatpush1.xpose.msra.mxu0 0.0
        %1765 = vmatprep.subr.mxu0 0.0
        %1766 = vmatpush1.xpose.msra.mxu0 0.0
        %1767 = vmatprep.subr.mxu0 0.0
        %1768 = vmatpush1.xpose.msra.mxu0 0.0
        %1769 = vmatprep.subr.mxu0 0.0
        %1770 = vmatpush1.xpose.msra.mxu0 0.0
        %1771 = vmatprep.subr.mxu0 0.0
        %1772 = vmatpush1.xpose.msra.mxu0 0.0
        %1773 = vmatprep.subr.mxu0 0.0
        %1774 = vmatpush1.xpose.msra.mxu0 0.0
        %1775 = vmatprep.subr.mxu0 0.0
        %1776 = vmatpush1.xpose.msra.mxu0 0.0
        %1777 = vmatprep.subr.mxu0 0.0
        %1778 = vmatpush1.xpose.msra.mxu0 0.0
        %1779 = vmatprep.subr.mxu0 0.0
        %1780 = vmatpush1.xpose.msra.mxu0 0.0
        %1781 = vmatprep.subr.mxu0 0.0
        %1782 = vmatpush1.xpose.msra.mxu0 0.0
        %1783 = vmatprep.subr.mxu0 0.0
        %1784 = vmatpush1.xpose.msra.mxu0 0.0
        %1785 = vmatprep.subr.mxu0 0.0
        %1786 = vmatpush1.xpose.msra.mxu0 0.0
        %1787 = vmatprep.subr.mxu0 0.0
        %1788 = vmatpush1.xpose.msra.mxu0 0.0
        %1789 = vmatprep.subr.mxu0 0.0
        %1790 = vmatpush1.xpose.msra.mxu0 0.0
        %1791 = vmatprep.subr.mxu0 0.0
        %1792 = vmatpush1.xpose.msra.mxu0 0.0
        %1793 = vmatprep.mubr.f32.mxu0 0.0
        %1794 = vmatmul.mubr.f32.gmra.mrb[0].mxu0 %v872
        %v1795 = vpop.f32.mrb[0].mxu0
        %v1796 = vadd.f32 0.0, %v1795
        %v1797 = vpop.f32.mrb[0].mxu0
        %1798 = vdwg.mxu0
        %1799 = vmatprep.subr.mxu0 0.0
        %1800 = vmatpush1.xpose.msra.mxu0 %v1127
        %1801 = vmatprep.subr.mxu0 0.0
        %1802 = vmatpush1.xpose.msra.mxu0 %v1132
        %1803 = vmatprep.subr.mxu0 0.0
        %1804 = vmatpush1.xpose.msra.mxu0 0.0
        %1805 = vmatprep.subr.mxu0 0.0
        %1806 = vmatpush1.xpose.msra.mxu0 0.0
        %1807 = vmatprep.subr.mxu0 0.0
        %1808 = vmatpush1.xpose.msra.mxu0 0.0
        %1809 = vmatprep.subr.mxu0 0.0
        %1810 = vmatpush1.xpose.msra.mxu0 0.0
        %1811 = vmatprep.subr.mxu0 0.0
        %1812 = vmatpush1.xpose.msra.mxu0 0.0
        %1813 = vmatprep.subr.mxu0 0.0
        %1814 = vmatpush1.xpose.msra.mxu0 0.0
        %1815 = vmatprep.subr.mxu0 0.0
        %1816 = vmatpush1.xpose.msra.mxu0 0.0
        %1817 = vmatprep.subr.mxu0 0.0
        %1818 = vmatpush1.xpose.msra.mxu0 0.0
        %1819 = vmatprep.subr.mxu0 0.0
        %1820 = vmatpush1.xpose.msra.mxu0 0.0
        %1821 = vmatprep.subr.mxu0 0.0
        %1822 = vmatpush1.xpose.msra.mxu0 0.0
        %1823 = vmatprep.subr.mxu0 0.0
        %1824 = vmatpush1.xpose.msra.mxu0 0.0
        %1825 = vmatprep.subr.mxu0 0.0
        %1826 = vmatpush1.xpose.msra.mxu0 0.0
        %1827 = vmatprep.subr.mxu0 0.0
        %1828 = vmatpush1.xpose.msra.mxu0 0.0
        %1829 = vmatprep.subr.mxu0 0.0
        %1830 = vmatpush1.xpose.msra.mxu0 0.0
        %1831 = vmatprep.subr.mxu0 0.0
        %1832 = vmatpush1.xpose.msra.mxu0 0.0
        %1833 = vmatprep.subr.mxu0 0.0
        %1834 = vmatpush1.xpose.msra.mxu0 0.0
        %1835 = vmatprep.subr.mxu0 0.0
        %1836 = vmatpush1.xpose.msra.mxu0 0.0
        %1837 = vmatprep.subr.mxu0 0.0
        %1838 = vmatpush1.xpose.msra.mxu0 0.0
        %1839 = vmatprep.subr.mxu0 0.0
        %1840 = vmatpush1.xpose.msra.mxu0 0.0
        %1841 = vmatprep.subr.mxu0 0.0
        %1842 = vmatpush1.xpose.msra.mxu0 0.0
        %1843 = vmatprep.subr.mxu0 0.0
        %1844 = vmatpush1.xpose.msra.mxu0 0.0
        %1845 = vmatprep.subr.mxu0 0.0
        %1846 = vmatpush1.xpose.msra.mxu0 0.0
        %1847 = vmatprep.subr.mxu0 0.0
        %1848 = vmatpush1.xpose.msra.mxu0 0.0
        %1849 = vmatprep.subr.mxu0 0.0
        %1850 = vmatpush1.xpose.msra.mxu0 0.0
        %1851 = vmatprep.subr.mxu0 0.0
        %1852 = vmatpush1.xpose.msra.mxu0 0.0
        %1853 = vmatprep.subr.mxu0 0.0
        %1854 = vmatpush1.xpose.msra.mxu0 0.0
        %1855 = vmatprep.subr.mxu0 0.0
        %1856 = vmatpush1.xpose.msra.mxu0 0.0
        %1857 = vmatprep.subr.mxu0 0.0
        %1858 = vmatpush1.xpose.msra.mxu0 0.0
        %1859 = vmatprep.subr.mxu0 0.0
        %1860 = vmatpush1.xpose.msra.mxu0 0.0
        %1861 = vmatprep.subr.mxu0 0.0
        %1862 = vmatpush1.xpose.msra.mxu0 0.0
        %1863 = vmatprep.mubr.f32.mxu0 0.0
        %1864 = vmatmul.mubr.f32.gmra.mrb[0].mxu0 %v878
        %v1865 = vpop.f32.mrb[0].mxu0
        %v1866 = vadd.f32 0.0, %v1865
        %v1867 = vpop.f32.mrb[0].mxu0
        %1868 = vdwg.mxu0
        %1869 = vmatprep.subr.mxu0 0.0
        %1870 = vmatpush1.xpose.msra.mxu0 %v1137
        %1871 = vmatprep.subr.mxu0 0.0
        %1872 = vmatpush1.xpose.msra.mxu0 %v1142
        %1873 = vmatprep.subr.mxu0 0.0
        %1874 = vmatpush1.xpose.msra.mxu0 0.0
        %1875 = vmatprep.subr.mxu0 0.0
        %1876 = vmatpush1.xpose.msra.mxu0 0.0
        %1877 = vmatprep.subr.mxu0 0.0
        %1878 = vmatpush1.xpose.msra.mxu0 0.0
        %1879 = vmatprep.subr.mxu0 0.0
        %1880 = vmatpush1.xpose.msra.mxu0 0.0
        %1881 = vmatprep.subr.mxu0 0.0
        %1882 = vmatpush1.xpose.msra.mxu0 0.0
        %1883 = vmatprep.subr.mxu0 0.0
        %1884 = vmatpush1.xpose.msra.mxu0 0.0
        %1885 = vmatprep.subr.mxu0 0.0
        %1886 = vmatpush1.xpose.msra.mxu0 0.0
        %1887 = vmatprep.subr.mxu0 0.0
        %1888 = vmatpush1.xpose.msra.mxu0 0.0
        %1889 = vmatprep.subr.mxu0 0.0
        %1890 = vmatpush1.xpose.msra.mxu0 0.0
        %1891 = vmatprep.subr.mxu0 0.0
        %1892 = vmatpush1.xpose.msra.mxu0 0.0
        %1893 = vmatprep.subr.mxu0 0.0
        %1894 = vmatpush1.xpose.msra.mxu0 0.0
        %1895 = vmatprep.subr.mxu0 0.0
        %1896 = vmatpush1.xpose.msra.mxu0 0.0
        %1897 = vmatprep.subr.mxu0 0.0
        %1898 = vmatpush1.xpose.msra.mxu0 0.0
        %1899 = vmatprep.subr.mxu0 0.0
        %1900 = vmatpush1.xpose.msra.mxu0 0.0
        %1901 = vmatprep.subr.mxu0 0.0
        %1902 = vmatpush1.xpose.msra.mxu0 0.0
        %1903 = vmatprep.subr.mxu0 0.0
        %1904 = vmatpush1.xpose.msra.mxu0 0.0
        %1905 = vmatprep.subr.mxu0 0.0
        %1906 = vmatpush1.xpose.msra.mxu0 0.0
        %1907 = vmatprep.subr.mxu0 0.0
        %1908 = vmatpush1.xpose.msra.mxu0 0.0
        %1909 = vmatprep.subr.mxu0 0.0
        %1910 = vmatpush1.xpose.msra.mxu0 0.0
        %1911 = vmatprep.subr.mxu0 0.0
        %1912 = vmatpush1.xpose.msra.mxu0 0.0
        %1913 = vmatprep.subr.mxu0 0.0
        %1914 = vmatpush1.xpose.msra.mxu0 0.0
        %1915 = vmatprep.subr.mxu0 0.0
        %1916 = vmatpush1.xpose.msra.mxu0 0.0
        %1917 = vmatprep.subr.mxu0 0.0
        %1918 = vmatpush1.xpose.msra.mxu0 0.0
        %1919 = vmatprep.subr.mxu0 0.0
        %1920 = vmatpush1.xpose.msra.mxu0 0.0
        %1921 = vmatprep.subr.mxu0 0.0
        %1922 = vmatpush1.xpose.msra.mxu0 0.0
        %1923 = vmatprep.subr.mxu0 0.0
        %1924 = vmatpush1.xpose.msra.mxu0 0.0
        %1925 = vmatprep.subr.mxu0 0.0
        %1926 = vmatpush1.xpose.msra.mxu0 0.0
        %1927 = vmatprep.subr.mxu0 0.0
        %1928 = vmatpush1.xpose.msra.mxu0 0.0
        %1929 = vmatprep.subr.mxu0 0.0
        %1930 = vmatpush1.xpose.msra.mxu0 0.0
        %1931 = vmatprep.subr.mxu0 0.0
        %1932 = vmatpush1.xpose.msra.mxu0 0.0
        %1933 = vmatprep.mubr.f32.mxu0 0.0
        %1934 = vmatmul.mubr.f32.gmra.mrb[0].mxu0 %v884
        %v1935 = vpop.f32.mrb[0].mxu0
        %v1936 = vadd.f32 0.0, %v1935
        %v1937 = vpop.f32.mrb[0].mxu0
        %1938 = vdwg.mxu0
        %1939 = vmatprep.subr.mxu0 0.0
        %1940 = vmatpush1.xpose.msra.mxu0 %v1147
        %1941 = vmatprep.subr.mxu0 0.0
        %1942 = vmatpush1.xpose.msra.mxu0 %v1152
        %1943 = vmatprep.subr.mxu0 0.0
        %1944 = vmatpush1.xpose.msra.mxu0 0.0
        %1945 = vmatprep.subr.mxu0 0.0
        %1946 = vmatpush1.xpose.msra.mxu0 0.0
        %1947 = vmatprep.subr.mxu0 0.0
        %1948 = vmatpush1.xpose.msra.mxu0 0.0
        %1949 = vmatprep.subr.mxu0 0.0
        %1950 = vmatpush1.xpose.msra.mxu0 0.0
        %1951 = vmatprep.subr.mxu0 0.0
        %1952 = vmatpush1.xpose.msra.mxu0 0.0
        %1953 = vmatprep.subr.mxu0 0.0
        %1954 = vmatpush1.xpose.msra.mxu0 0.0
        %1955 = vmatprep.subr.mxu0 0.0
        %1956 = vmatpush1.xpose.msra.mxu0 0.0
        %1957 = vmatprep.subr.mxu0 0.0
        %1958 = vmatpush1.xpose.msra.mxu0 0.0
        %1959 = vmatprep.subr.mxu0 0.0
        %1960 = vmatpush1.xpose.msra.mxu0 0.0
        %1961 = vmatprep.subr.mxu0 0.0
        %1962 = vmatpush1.xpose.msra.mxu0 0.0
        %1963 = vmatprep.subr.mxu0 0.0
        %1964 = vmatpush1.xpose.msra.mxu0 0.0
        %1965 = vmatprep.subr.mxu0 0.0
        %1966 = vmatpush1.xpose.msra.mxu0 0.0
        %1967 = vmatprep.subr.mxu0 0.0
        %1968 = vmatpush1.xpose.msra.mxu0 0.0
        %1969 = vmatprep.subr.mxu0 0.0
        %1970 = vmatpush1.xpose.msra.mxu0 0.0
        %1971 = vmatprep.subr.mxu0 0.0
        %1972 = vmatpush1.xpose.msra.mxu0 0.0
        %1973 = vmatprep.subr.mxu0 0.0
        %1974 = vmatpush1.xpose.msra.mxu0 0.0
        %1975 = vmatprep.subr.mxu0 0.0
        %1976 = vmatpush1.xpose.msra.mxu0 0.0
        %1977 = vmatprep.subr.mxu0 0.0
        %1978 = vmatpush1.xpose.msra.mxu0 0.0
        %1979 = vmatprep.subr.mxu0 0.0
        %1980 = vmatpush1.xpose.msra.mxu0 0.0
        %1981 = vmatprep.subr.mxu0 0.0
        %1982 = vmatpush1.xpose.msra.mxu0 0.0
        %1983 = vmatprep.subr.mxu0 0.0
        %1984 = vmatpush1.xpose.msra.mxu0 0.0
        %1985 = vmatprep.subr.mxu0 0.0
        %1986 = vmatpush1.xpose.msra.mxu0 0.0
        %1987 = vmatprep.subr.mxu0 0.0
        %1988 = vmatpush1.xpose.msra.mxu0 0.0
        %1989 = vmatprep.subr.mxu0 0.0
        %1990 = vmatpush1.xpose.msra.mxu0 0.0
        %1991 = vmatprep.subr.mxu0 0.0
        %1992 = vmatpush1.xpose.msra.mxu0 0.0
        %1993 = vmatprep.subr.mxu0 0.0
        %1994 = vmatpush1.xpose.msra.mxu0 0.0
        %1995 = vmatprep.subr.mxu0 0.0
        %1996 = vmatpush1.xpose.msra.mxu0 0.0
        %1997 = vmatprep.subr.mxu0 0.0
        %1998 = vmatpush1.xpose.msra.mxu0 0.0
        %1999 = vmatprep.subr.mxu0 0.0
        %2000 = vmatpush1.xpose.msra.mxu0 0.0
        %2001 = vmatprep.subr.mxu0 0.0
        %2002 = vmatpush1.xpose.msra.mxu0 0.0
        %2003 = vmatprep.mubr.f32.mxu0 0.0
        %2004 = vmatmul.mubr.f32.gmra.mrb[0].mxu0 %v890
        %v2005 = vpop.f32.mrb[0].mxu0
        %v2006 = vadd.f32 0.0, %v2005
        %v2007 = vpop.f32.mrb[0].mxu0
        %2008 = vdwg.mxu0
        %2009 = vst.msk [vmem:[%s523] sm:$0xff] %vm1155, %v1796
        %2010 = vst.msk [vmem:[%s523 + $0x8] sm:$0xff] %vm1155, %v1866
        %2011 = vst.msk [vmem:[%s523 + $0x10] sm:$0xff] %vm1155, %v1936
        %2012 = vst.msk [vmem:[%s523 + $0x18] sm:$0xff] %vm1155, %v2006
        %s2013 = sand.u32 %s289, 1
        %s2014 = scalar_lea.sflag [#allocation3], %s2013
        %s2015 = sand.u32 %s289, 1
        %s2016 = smul.addr %s2015, 32
        %s2017 = scalar_lea.vmem [#allocation2], %s2016
        %s2018 = sand.u32 %s35, 1
        %s2019 = scalar_lea.sflag [#allocation5], %s2018
        %s2020 = sand.u32 %s315, 1
        %s2021 = smul.addr %s2020, 32
        %s2022 = scalar_lea.vmem [#allocation4], %s2021
        %s2023 = sand.u32 %s35, 1
        %s2024 = scalar_lea.sflag [#allocation5], %s2023
        %s2025 = sand.u32 %s341, 1
        %s2026 = smul.addr %s2025, 32
        %s2027 = scalar_lea.vmem [#allocation6], %s2026
        %s2028 = sand.u32 %s367, 1
        %s2029 = scalar_lea.sflag [#allocation8], %s2028
        %s2030 = sand.u32 %s367, 1
        %s2031 = smul.addr %s2030, 32
        %s2032 = scalar_lea.vmem [#allocation7], %s2031
        // Predicated region
        $region65: #{doctor_heads_forward.1} parent=63 // pred_check
          %p2033 = pneg %p299
        $region66: #{doctor_heads_forward.1} parent=63 // pred_check_branch
          %2035 = sbr.rel (%p2033) target = $region68
        $region67: #{doctor_heads_forward.1} parent=63 // pred_region
          %s2036 = smul.u32 4, %s35
          %s2038 = ssub.s32 512, 512
          %2039 = vsyncadd %s2014, %s2038
          %s2040 = smul.addr %s2036, 128
          %s2041 = scalar_lea.hbm %s11, %s2040
          %s2042 = sshll.u32 %s2017, 4
          %s2043 = int_to_ptr.vmem [resolvable:$true] %s2042
          %2048 = dma.vmem_to_hbm [thread:$0]  %s2043, 512, %s2041, %s2014, 128, 128, 8
        $region68: #{doctor_heads_forward.1} parent=63 // pred_fallthru
          _
        // Predicated region
        $region69: #{doctor_heads_forward.1} parent=63 // pred_check
          %p2049 = pneg %p325
        $region70: #{doctor_heads_forward.1} parent=63 // pred_check_branch
          %2051 = sbr.rel (%p2049) target = $region72
        $region71: #{doctor_heads_forward.1} parent=63 // pred_region
          %s2052 = smul.u32 4, %s35
          %s2054 = ssub.s32 512, 512
          %2055 = vsyncadd %s2019, %s2054
          %s2056 = smul.addr %s2052, 128
          %s2057 = scalar_lea.hbm %s12, %s2056
          %s2058 = sshll.u32 %s2022, 4
          %s2059 = int_to_ptr.vmem [resolvable:$true] %s2058
          %2064 = dma.vmem_to_hbm [thread:$0]  %s2059, 512, %s2057, %s2019, 128, 128, 8
        $region72: #{doctor_heads_forward.1} parent=63 // pred_fallthru
          _
        // Predicated region
        $region73: #{doctor_heads_forward.1} parent=63 // pred_check
          %p2065 = pneg %p351
        $region74: #{doctor_heads_forward.1} parent=63 // pred_check_branch
          %2067 = sbr.rel (%p2065) target = $region76
        $region75: #{doctor_heads_forward.1} parent=63 // pred_region
          %s2068 = smul.u32 4, %s35
          %s2070 = ssub.s32 512, 512
          %2071 = vsyncadd %s2024, %s2070
          %s2072 = smul.addr %s2068, 128
          %s2073 = scalar_lea.hbm %s13, %s2072
          %s2074 = sshll.u32 %s2027, 4
          %s2075 = int_to_ptr.vmem [resolvable:$true] %s2074
          %2080 = dma.vmem_to_hbm [thread:$0]  %s2075, 512, %s2073, %s2024, 128, 128, 8
        $region76: #{doctor_heads_forward.1} parent=63 // pred_fallthru
          _
        // Predicated region
        $region77: #{doctor_heads_forward.1} parent=63 // pred_check
          %p2081 = pneg %p377
        $region78: #{doctor_heads_forward.1} parent=63 // pred_check_branch
          %2083 = sbr.rel (%p2081) target = $region80
        $region79: #{doctor_heads_forward.1} parent=63 // pred_region
          %s2084 = smul.u32 4, %s35
          %s2086 = ssub.s32 512, 512
          %2087 = vsyncadd %s2029, %s2086
          %s2088 = smul.addr %s2084, 128
          %s2089 = scalar_lea.hbm %s14, %s2088
          %s2090 = sshll.u32 %s2032, 4
          %s2091 = int_to_ptr.vmem [resolvable:$true] %s2090
          %2096 = dma.vmem_to_hbm [thread:$0]  %s2091, 512, %s2089, %s2029, 128, 128, 8
        $region80: #{doctor_heads_forward.1} parent=63 // pred_fallthru
          _
      $region64: #{doctor_heads_forward.1} parent=5 // pred_fallthru
        _
      %p2097 = scmp.le.s32.totalorder 2, %s30
      // Predicated region
      $region81: #{doctor_heads_forward.1} parent=5 // pred_check
        %p2098 = pneg %p2097
      $region82: #{doctor_heads_forward.1} parent=5 // pred_check_branch
        %2100 = sbr.rel (%p2098) target = $region84
      $region83: #{doctor_heads_forward.1} parent=5 // pred_region
        %s2101 = ssub.s32 %s30, 2
        // Predicated region
        $region85: #{doctor_heads_forward.1} parent=83 // pred_check
          %p2102 = pneg %p305
        $region86: #{doctor_heads_forward.1} parent=83 // pred_check_branch
          %2104 = sbr.rel (%p2102) target = $region88
        $region87: #{doctor_heads_forward.1} parent=83 // pred_region
          %s2105 = sand.u32 %s290, 1
          %s2106 = scalar_lea.sflag [#allocation3], %s2105
          %s2107 = sand.u32 %s290, 1
          %s2108 = smul.addr %s2107, 32
          %s2109 = scalar_lea.vmem [#allocation2], %s2108
          %2110 = dma.done %s2106, 512
        $region88: #{doctor_heads_forward.1} parent=83 // pred_fallthru
          _
        // Predicated region
        $region89: #{doctor_heads_forward.1} parent=83 // pred_check
          %p2111 = pneg %p331
        $region90: #{doctor_heads_forward.1} parent=83 // pred_check_branch
          %2113 = sbr.rel (%p2111) target = $region92
        $region91: #{doctor_heads_forward.1} parent=83 // pred_region
          %s2114 = sand.u32 %s36, 1
          %s2115 = scalar_lea.sflag [#allocation5], %s2114
          %s2116 = sand.u32 %s316, 1
          %s2117 = smul.addr %s2116, 32
          %s2118 = scalar_lea.vmem [#allocation4], %s2117
          %2119 = dma.done %s2115, 512
        $region92: #{doctor_heads_forward.1} parent=83 // pred_fallthru
          _
        // Predicated region
        $region93: #{doctor_heads_forward.1} parent=83 // pred_check
          %p2120 = pneg %p357
        $region94: #{doctor_heads_forward.1} parent=83 // pred_check_branch
          %2122 = sbr.rel (%p2120) target = $region96
        $region95: #{doctor_heads_forward.1} parent=83 // pred_region
          %s2123 = sand.u32 %s36, 1
          %s2124 = scalar_lea.sflag [#allocation5], %s2123
          %s2125 = sand.u32 %s342, 1
          %s2126 = smul.addr %s2125, 32
          %s2127 = scalar_lea.vmem [#allocation6], %s2126
          %2128 = dma.done %s2124, 512
        $region96: #{doctor_heads_forward.1} parent=83 // pred_fallthru
          _
        // Predicated region
        $region97: #{doctor_heads_forward.1} parent=83 // pred_check
          %p2129 = pneg %p383
        $region98: #{doctor_heads_forward.1} parent=83 // pred_check_branch
          %2131 = sbr.rel (%p2129) target = $region100
        $region99: #{doctor_heads_forward.1} parent=83 // pred_region
          %s2132 = sand.u32 %s368, 1
          %s2133 = scalar_lea.sflag [#allocation8], %s2132
          %s2134 = sand.u32 %s368, 1
          %s2135 = smul.addr %s2134, 32
          %s2136 = scalar_lea.vmem [#allocation7], %s2135
          %2137 = dma.done %s2133, 512
        $region100: #{doctor_heads_forward.1} parent=83 // pred_fallthru
          _
      $region84: #{doctor_heads_forward.1} parent=5 // pred_fallthru
        _
    $region6: #{doctor_heads_forward.1} parent=1 // loop_footer
      %s34 = sadd.s32 1, %s30
    $region7: #{doctor_heads_forward.1} parent=1 // loop_footer_branch
      %29 = sbr.rel target = $region3
    $region8: #{doctor_heads_forward.1} parent=1 // loop_exit
      _
    %2138 = vsyncpa [#allocation3], 1
    %s2139 = scalar_lea.sflag [#allocation3], 1
    %2140 = vsyncpa %s2139, 1
    %2141 = vsyncpa [#allocation5], 1
    %s2142 = scalar_lea.sflag [#allocation5], 1
    %2143 = vsyncpa %s2142, 1
    %2144 = vsyncpa [#allocation8], 1
    %s2145 = scalar_lea.sflag [#allocation8], 1
    %2146 = vsyncpa %s2145, 1

</llo_original>
